<compile_context>
chip_gen: v7x
topology: tpu7x:2x2x1
jax: 0.10.0
libtpu: 0.0.40
codegen_flags: <defaults>
</compile_context>

<pallas_src>
import numpy as np
import jax
import jax.numpy as jnp
from jax import lax
from jax.experimental import pallas as pl
from jax.experimental.pallas import tpu as pltpu


def _default_vmem_limit():
    """~3/4 of the physical per-core VMEM (48 MiB on v7x, 96 MiB on v5e/v6e)."""
    try:
        info = pltpu.get_tpu_info()
        cap = getattr(info, "vmem_capacity_bytes", 0)
        if cap:
            return min(int(cap) * 3 // 4, 96 * 1024 * 1024)
    except Exception:
        pass
    return 48 * 1024 * 1024


_VMEM_LIMIT = _default_vmem_limit()


def _pick_tile(n, pref=1024, bytes_per_col=None):
    """Lane tile for an axis of length n.  Returns (tile, padded_n).

    bytes_per_col caps the tile so double-buffered input+output blocks stay well
    inside the VMEM budget (matters on v7x's 64 MiB VMEM)."""
    if bytes_per_col:
        cap = max(128, ((_VMEM_LIMIT // 2) // max(bytes_per_col, 1)) // 128 * 128)
        pref = min(pref, cap)
    if n <= pref:
        return n, n
    top = max(pref - (pref % 128), 128)
    for t in range(top, 127, -128):
        if n % t == 0:
            return t, n
    return top, -(-n // top) * top


def _divisor_tile(n, pref=2048):
    """Largest lane tile <= pref dividing n; prefers multiples of 128."""
    if n <= pref:
        return n
    for t in range(pref - (pref % 128), 127, -128):
        if n % t == 0:
            return t
    # TODO(synk): pad Lo to a multiple of 128 instead of this non-lane-dense
    # fallback (masked vst partial stores).
    for t in range(pref, 0, -1):
        if n % t == 0:
            return t
    return n


# ---------------------------------------------------------------------------
# Pallas kernel 1: weight-stationary GEMM + bias (the transposed conv).
#   (Krows, Cin) @ (Cin, tile) + bias -> (Krows, tile), grid = (Sp/tile, N)
# ---------------------------------------------------------------------------
def _mm_bias_kernel(w_ref, b_ref, x_ref, o_ref):
    o_ref[...] = (
        jnp.dot(w_ref[...], x_ref[...], preferred_element_type=jnp.float32)
        + b_ref[...]
    ).astype(o_ref.dtype)


def _weight_lhs_gemm(w, bias, x, tile, out_dtype):
    """w: (Krows, Cin); bias: (Krows, 1); x: (N, Cin, Sp) -> (N, Krows, Sp)."""
    N, Cin, Sp = x.shape
    Krows = w.shape[0]
    flops = 2 * N * Sp * Krows * Cin
    bytes_accessed = (
        x.size * x.dtype.itemsize
        + w.size * w.dtype.itemsize
        + N * Krows * Sp * jnp.dtype(out_dtype).itemsize
    )
    return pl.pallas_call(
        _mm_bias_kernel,
        out_shape=jax.ShapeDtypeStruct((N, Krows, Sp), out_dtype),
        grid=(Sp // tile, N),                       # big parallel axis leading
        in_specs=[
            pl.BlockSpec((Krows, Cin), lambda t, n: (0, 0)),   # resident weights
            pl.BlockSpec((Krows, 1), lambda t, n: (0, 0)),     # resident bias
            pl.BlockSpec((None, Cin, tile), lambda t, n: (n, 0, t)),
        ],
        out_specs=pl.BlockSpec((None, Krows, tile), lambda t, n: (n, 0, t)),
        compiler_params=pltpu.CompilerParams(
            dimension_semantics=("parallel", "parallel"),
            vmem_limit_bytes=_VMEM_LIMIT,
        ),
        cost_estimate=pl.CostEstimate(
            flops=flops, transcendentals=0, bytes_accessed=bytes_accessed
        ),
    )(w, bias, x)


# ---------------------------------------------------------------------------
# Pallas kernel 2: 3x3x3 conv as a tap-stacked reduction GEMM (no im2col)
# with the GroupNorm sum / sum-of-squares fused into the epilogue.
#   Input  ypf : (N, Dp, Cin, P)  -- depth/H/W zero-padded, (H,W) flattened.
#   Outputs zq : (N, D2, Cout, Lo), sums/sqs: (N, D2, Cout, 1).
#   Columns v of each output row with (v % Wp) >= Wo are junk from the
#   flat-offset trick; masked in the statistics, stripped at the end.
#   grid = (D2, N, 3): kd is the trailing reduction axis, selected purely via
#   the input index_map (padded-depth block index z + kd).
# ---------------------------------------------------------------------------
def _conv3x3x3(w2s, bias, mask, ypf, Wp, Lo):
    N, Dp, Cin2, P = ypf.shape
    D2 = Dp - 2
    Cout = w2s.shape[1]
    offs = tuple(kh * Wp + kw for kh in range(3) for kw in range(3))

    def kernel(w_ref, b_ref, m_ref, x_ref, o_ref, s1_ref, s2_ref):
        kd = pl.program_id(2)
        x = x_ref[...]                                           # (Cin, P)
        # Stack the 9 in-plane taps along the contraction dim -> one MXU matmul.
        xcat = jnp.concatenate([x[:, off:off + Lo] for off in offs], axis=0)
        y = jnp.dot(w_ref[kd], xcat, preferred_element_type=jnp.float32)

        @pl.when(kd == 0)
        def _init():                       # bias-initialise the resident block
            o_ref[...] = y + b_ref[...]

        @pl.when(kd > 0)
        def _acc():                        # single read-modify-write per kd
            o_ref[...] = o_ref[...] + y

        @pl.when(kd == pl.num_programs(2) - 1)
        def _stats():                      # fused GroupNorm statistics
            z = o_ref[...]
            zm = jnp.where(m_ref[...] > 0.0, z, 0.0)             # mask junk cols
            s1_ref[...] = jnp.sum(zm, axis=-1, keepdims=True)
            s2_ref[...] = jnp.sum(zm * zm, axis=-1, keepdims=True)

    flops = 2 * N * D2 * 3 * Cout * (9 * Cin2) * Lo
    bytes_accessed = (
        3 * ypf.size * ypf.dtype.itemsize           # each plane read for 3 kd's
        + w2s.size * w2s.dtype.itemsize
        + N * D2 * Cout * Lo * 4
    )
    # TODO(synk): add a lane-tile grid axis over Lo (with a ~2*Wp+2 halo on the
    # input slice) for large decoder shapes so the resident (Cout, Lo) block +
    # double-buffered inputs fit v7x's 64 MiB VMEM.
    return pl.pallas_call(
        kernel,
        out_shape=(
            jax.ShapeDtypeStruct((N, D2, Cout, Lo), jnp.float32),
            jax.ShapeDtypeStruct((N, D2, Cout, 1), jnp.float32),
            jax.ShapeDtypeStruct((N, D2, Cout, 1), jnp.float32),
        ),
        grid=(D2, N, 3),                            # big parallel axis leading
        in_specs=[
            pl.BlockSpec((3, Cout, 9 * Cin2), lambda z, n, k: (0, 0, 0)),
            pl.BlockSpec((Cout, 1), lambda z, n, k: (0, 0)),
            pl.BlockSpec((1, Lo), lambda z, n, k: (0, 0)),
            pl.BlockSpec((None, None, Cin2, P), lambda z, n, k: (n, z + k, 0, 0)),
        ],
        out_specs=[
            pl.BlockSpec((None, None, Cout, Lo), lambda z, n, k: (n, z, 0, 0)),
            pl.BlockSpec((None, None, Cout, 1), lambda z, n, k: (n, z, 0, 0)),
            pl.BlockSpec((None, None, Cout, 1), lambda z, n, k: (n, z, 0, 0)),
        ],
        compiler_params=pltpu.CompilerParams(
            dimension_semantics=("parallel", "parallel", "arbitrary"),
            vmem_limit_bytes=_VMEM_LIMIT,
        ),
        cost_estimate=pl.CostEstimate(
            flops=flops, transcendentals=0, bytes_accessed=bytes_accessed
        ),
    )(w2s, bias, mask, ypf)


# ---------------------------------------------------------------------------
# Pallas kernel 3: GroupNorm affine + ReLU (statistics pre-folded into a, b).
#   zs: (N, D2, G, Cg, Lo); a, b: (N, G, Cg, 1); grid = (D2, N, G, Lo/tile)
# ---------------------------------------------------------------------------
def _gn_relu_kernel(x_ref, a_ref, b_ref, o_ref):
    o_ref[...] = jnp.maximum(x_ref[...] * a_ref[...] + b_ref[...], 0.0)


def _gn_relu(zs, a, b, tile):
    N, D2, G, Cg, Lo = zs.shape
    return pl.pallas_call(
        _gn_relu_kernel,
        out_shape=jax.ShapeDtypeStruct(zs.shape, zs.dtype),
        grid=(D2, N, G, Lo // tile),
        in_specs=[
            pl.BlockSpec(
                (None, None, None, Cg, tile), lambda z, n, g, t: (n, z, g, 0, t)
            ),
            pl.BlockSpec((None, None, Cg, 1), lambda z, n, g, t: (n, g, 0, 0)),
            pl.BlockSpec((None, None, Cg, 1), lambda z, n, g, t: (n, g, 0, 0)),
        ],
        out_specs=pl.BlockSpec(
            (None, None, None, Cg, tile), lambda z, n, g, t: (n, z, g, 0, t)
        ),
        compiler_params=pltpu.CompilerParams(
            dimension_semantics=("parallel",) * 4,
            vmem_limit_bytes=_VMEM_LIMIT,
        ),
        cost_estimate=pl.CostEstimate(
            flops=2 * zs.size,
            transcendentals=0,
            bytes_accessed=2 * zs.size * zs.dtype.itemsize + 2 * a.size * 4,
        ),
    )(zs, a, b)


# ---------------------------------------------------------------------------
# Deconv3DBlock forward
# ---------------------------------------------------------------------------
def deconv3d_block_forward(x, params, compute_dtype=jnp.float32):
    """x: (N, Cin, D, H, W) NCDHW, matching the PyTorch module.

    compute_dtype is the MXU operand dtype only (bf16 halves GEMM/glue DMA bytes
    on any generation); accumulation and all element-wise / GroupNorm math stay
    f32 (v5e has no bf16 VPU).  With bf16 expect ~1e-2 deviation vs. f32.
    """
    W1, b1, W2w, b2, gamma, beta = params
    N, Cin, D, H, W = x.shape
    Cout = W1.shape[1]
    Cin2 = W2w.shape[1]
    G = 2
    Cg = Cout // G
    Do, Ho, Wo = 2 * D, 2 * H, 2 * W
    item = jnp.dtype(compute_dtype).itemsize

    # ---- SingleDeconv3DBlock: ConvTranspose3d(k=2, s=2) as one GEMM --------
    S = D * H * W
    Krows = Cout * 8
    col_bytes = 2 * Cin * item + 2 * Krows * item        # double-buffered in+out
    tile1, Sp = _pick_tile(S, pref=1024, bytes_per_col=col_bytes)
    xc = x.reshape(N, Cin, S).astype(compute_dtype)      # NCDHW is spatial-last
    if Sp != S:
        xc = jnp.pad(xc, ((0, 0), (0, 0), (0, Sp - S)))
    w1m = (
        jnp.transpose(W1, (1, 2, 3, 4, 0)).reshape(Krows, Cin).astype(compute_dtype)
    )                                                    # rows (co, kd, kh, kw)
    b1r = jnp.repeat(b1, 8).reshape(Krows, 1)
    r = _weight_lhs_gemm(w1m, b1r, xc, tile1, compute_dtype)[:, :, :S]

    # ---- interleave taps to depth-major layout + zero-pad for the 3x3x3 ----
    # TODO(synk): fold this transpose/pad pass into the deconv out_spec / conv
    # index_maps (one HBM pass over the 8x-upsampled tensor; bf16 halves it).
    r = r.reshape(N, Cout, 2, 2, 2, D, H, W)
    y = jnp.transpose(r, (0, 5, 2, 1, 6, 3, 7, 4)).reshape(N, Do, Cout, Ho, Wo)
    Dp, Hp, Wp = Do + 2, Ho + 3, Wo + 2                  # extra bottom H row keeps
    yp = jnp.pad(y, ((0, 0), (1, 1), (0, 0), (1, 2), (1, 1)))  # flat reads in-bounds
    P = Hp * Wp
    Lo = Ho * Wp
    ypf = yp.reshape(N, Dp, Cout, P)

    # ---- SingleConv3DBlock: Conv3d(k=3, s=1, p=1) + fused GN statistics ----
    w2s = (
        jnp.transpose(W2w, (2, 0, 3, 4, 1))              # (kd, O, kh, kw, I)
        .reshape(3, Cout, 9 * Cin2)
        .astype(compute_dtype)
    )
    b2c = b2.reshape(Cout, 1)
    mask = ((jnp.arange(Lo, dtype=jnp.int32) % Wp) < Wo).astype(jnp.float32)
    mask = mask.reshape(1, Lo)
    zq, sums, sqs = _conv3x3x3(w2s, b2c, mask, ypf, Wp, Lo)   # (N, Do, Cout, Lo)

    # ---- GroupNorm(2) + ReLU ------------------------------------------------
    # Finish the (N, G) reduction on the tiny fused-statistics outputs.
    s1 = sums.reshape(N, Do, G, Cg).sum(axis=(1, 3))          # (N, G)
    s2 = sqs.reshape(N, Do, G, Cg).sum(axis=(1, 3))
    cnt = float(Cg * Do * Ho * Wo)
    mean = s1 / cnt
    var = jnp.maximum(s2 / cnt - mean * mean, 0.0)            # biased (PyTorch GN)
    inv = lax.rsqrt(var + 1e-5)
    a = gamma.reshape(1, G, Cg) * inv[:, :, None]             # (N, G, Cg)
    bshift = beta.reshape(1, G, Cg) - mean[:, :, None] * a

    zs = zq.reshape(N, Do, G, Cg, Lo)
    tile2 = _divisor_tile(Lo)
    out5 = _gn_relu(
        zs, a.reshape(N, G, Cg, 1), bshift.reshape(N, G, Cg, 1), tile2
    )                                                         # (N, Do, G, Cg, Lo)

    # ---- strip pad columns + back to NCDHW (single fused XLA copy) ----------
    # TODO(synk): fold this transpose into the GN/ReLU out_spec once size-1
    # second-minor output blocks are supported for a channel-before-depth layout.
    out = out5.reshape(N, Do, Cout, Ho, Wp)
    return jnp.transpose(out, (0, 2, 1, 3, 4))[..., :Wo]      # (N, Cout, Do, Ho, Wo)


# ---------------------------------------------------------------------------
# Pure-JAX reference for verification
# ---------------------------------------------------------------------------
def reference_forward(x, params):
    W1, b1, W2, b2, gamma, beta = params
    N, Cin, D, H, W = x.shape
    Cout = W1.shape[1]
    # ConvTranspose3d(k=2,s=2,p=0) == conv with lhs_dilation=2, pad=1, flipped kernel
    w1f = jnp.flip(W1, axis=(2, 3, 4)).transpose(1, 0, 2, 3, 4)
    y = lax.conv_general_dilated(
        x, w1f, window_strides=(1, 1, 1), padding=[(1, 1)] * 3,
        lhs_dilation=(2, 2, 2),
        dimension_numbers=("NCDHW", "OIDHW", "NCDHW"),
    ) + b1[None, :, None, None, None]
    z = lax.conv_general_dilated(
        y, W2, window_strides=(1, 1, 1), padding=[(1, 1)] * 3,
        dimension_numbers=("NCDHW", "OIDHW", "NCDHW"),
    ) + b2[None, :, None, None, None]
    G, Cg = 2, Cout // 2
    zr = z.reshape(N, G, Cg, -1)
    mean = jnp.mean(zr, axis=(2, 3), keepdims=True)
    var = jnp.mean(jnp.square(zr - mean), axis=(2, 3), keepdims=True)
    zn = ((zr - mean) * lax.rsqrt(var + 1e-5)).reshape(z.shape)
    zn = zn * gamma[None, :, None, None, None] + beta[None, :, None, None, None]
    return jnp.maximum(zn, 0.0)


# ---------------------------------------------------------------------------
if __name__ == "__main__":
    # small shapes consistent with the module
    N, Cin, Cout = 2, 4, 8
    D = H = W = 4

    key = jax.random.PRNGKey(0)
    k1, k2, k3, k4, k5 = jax.random.split(key, 5)

    # deterministic synthetic parameters (PyTorch-shaped)
    W1 = jax.random.normal(k1, (Cin, Cout, 2, 2, 2), jnp.float32) * 0.1   # ConvTranspose3d
    b1 = jax.random.normal(k2, (Cout,), jnp.float32) * 0.1
    W2 = jax.random.normal(k3, (Cout, Cout, 3, 3, 3), jnp.float32) * 0.1  # Conv3d
    b2 = jax.random.normal(k4, (Cout,), jnp.float32) * 0.1
    gamma = jnp.ones((Cout,), jnp.float32)    # GroupNorm default init
    beta = jnp.zeros((Cout,), jnp.float32)
    params = (W1, b1, W2, b2, gamma, beta)

    x = jax.random.normal(k5, (N, Cin, D, H, W), jnp.float32)

    fwd = jax.jit(deconv3d_block_forward)
    out = jax.block_until_ready(fwd(x, params))

    ref = jax.block_until_ready(reference_forward(x, params))
    assert out.shape == (N, Cout, 2 * D, 2 * H, 2 * W), out.shape
    np.testing.assert_allclose(np.asarray(out), np.asarray(ref), rtol=1e-3, atol=1e-3)

    print("KERNEL_OK")
</pallas_src>

<mosaic_0001>
module attributes {stable_mosaic.version = 11 : i64} {
  func.func @_mm_bias_kernel(%arg0: i32, %arg1: i32, %arg2: memref<64x4xf32, #tpu.memory_space<vmem>>, %arg3: memref<64x1xf32, #tpu.memory_space<vmem>>, %arg4: memref<1x4x64xf32, #tpu.memory_space<vmem>>, %arg5: memref<1x64x64xf32, #tpu.memory_space<vmem>>) attributes {dimension_semantics = [#tpu.dimension_semantics<parallel>, #tpu.dimension_semantics<parallel>], iteration_bounds = array<i64: 1, 2>, scalar_prefetch = 0 : i64, scratch_operands = 0 : i64, tpu.core_type = #tpu.core_type<tc>, window_params = [{pipeline_mode = #tpu.pipeline_mode<synchronous>, transform_indices = @transform_0, window_bounds = array<i64: 64, 4>}, {pipeline_mode = #tpu.pipeline_mode<synchronous>, transform_indices = @transform_1, window_bounds = array<i64: 64, 1>}, {transform_indices = @transform_2, window_bounds = array<i64: 1, 4, 64>}, {transform_indices = @transform_3, window_bounds = array<i64: 1, 64, 64>}]} {
    %c0 = arith.constant 0 : index
    %c0_0 = arith.constant 0 : index
    %0 = vector.load %arg2[%c0, %c0_0] : memref<64x4xf32, #tpu.memory_space<vmem>>, vector<64x4xf32>
    %c0_1 = arith.constant 0 : index
    %c0_2 = arith.constant 0 : index
    %c0_3 = arith.constant 0 : index
    %1 = vector.load %arg4[%c0_1, %c0_2, %c0_3] : memref<1x4x64xf32, #tpu.memory_space<vmem>>, vector<1x4x64xf32>
    %2 = vector.shape_cast %1 : vector<1x4x64xf32> to vector<4x64xf32>
    %cst = arith.constant dense<0.000000e+00> : vector<64x64xf32>
    %3 = tpu.matmul %0, %2, %cst {dimension_numbers = #tpu.dot_dimension_numbers<[1], [0], [0], [1], [0, 0, 1, 1], [], []>} : vector<64x4xf32>, vector<4x64xf32>, vector<64x64xf32> -> vector<64x64xf32>
    %c0_4 = arith.constant 0 : index
    %c0_5 = arith.constant 0 : index
    %4 = vector.load %arg3[%c0_4, %c0_5] : memref<64x1xf32, #tpu.memory_space<vmem>>, vector<64x1xf32>
    %5 = vector.broadcast %4 : vector<64x1xf32> to vector<64x64xf32>
    %6 = arith.addf %3, %5 : vector<64x64xf32>
    %c0_6 = arith.constant 0 : index
    %c0_7 = arith.constant 0 : index
    %c0_8 = arith.constant 0 : index
    %7 = vector.load %arg5[%c0_6, %c0_7, %c0_8] : memref<1x64x64xf32, #tpu.memory_space<vmem>>, vector<1x64x64xf32>
    %8 = vector.shape_cast %7 : vector<1x64x64xf32> to vector<64x64xf32>
    %9 = vector.shape_cast %6 : vector<64x64xf32> to vector<1x64x64xf32>
    tpu.vector_store %arg5[%c0_6, %c0_7, %c0_8], %9 {strides = array<i32>} : memref<1x64x64xf32, #tpu.memory_space<vmem>>, vector<1x64x64xf32>,
    return
  }
  func.func @transform_0(%arg0: i32, %arg1: i32) -> (i32, i32) {
    %c0_i32 = arith.constant 0 : i32
    %c0_i32_0 = arith.constant 0 : i32
    %c0_i32_1 = arith.constant 0 : i32
    return %c0_i32, %c0_i32_0 : i32, i32
  }
  func.func @transform_1(%arg0: i32, %arg1: i32) -> (i32, i32) {
    %c0_i32 = arith.constant 0 : i32
    %c0_i32_0 = arith.constant 0 : i32
    %c0_i32_1 = arith.constant 0 : i32
    return %c0_i32, %c0_i32_0 : i32, i32
  }
  func.func @transform_2(%arg0: i32, %arg1: i32) -> (i32, i32, i32) {
    %c0_i32 = arith.constant 0 : i32
    %c0_i32_0 = arith.constant 0 : i32
    return %arg1, %c0_i32, %arg0 : i32, i32, i32
  }
  func.func @transform_3(%arg0: i32, %arg1: i32) -> (i32, i32, i32) {
    %c0_i32 = arith.constant 0 : i32
    %c0_i32_0 = arith.constant 0 : i32
    return %arg1, %c0_i32, %arg0 : i32, i32, i32
  }
}

module attributes {stable_mosaic.version = 11 : i64} {
  func.func @kernel(%arg0: i32, %arg1: i32, %arg2: i32, %arg3: memref<3x8x72xf32, #tpu.memory_space<vmem>>, %arg4: memref<8x1xf32, #tpu.memory_space<vmem>>, %arg5: memref<1x80xf32, #tpu.memory_space<vmem>>, %arg6: memref<1x1x8x110xf32, #tpu.memory_space<vmem>>, %arg7: memref<1x1x8x80xf32, #tpu.memory_space<vmem>>, %arg8: memref<1x1x8x1xf32, #tpu.memory_space<vmem>>, %arg9: memref<1x1x8x1xf32, #tpu.memory_space<vmem>>) attributes {dimension_semantics = [#tpu.dimension_semantics<parallel>, #tpu.dimension_semantics<parallel>, #tpu.dimension_semantics<arbitrary>], iteration_bounds = array<i64: 8, 2, 3>, scalar_prefetch = 0 : i64, scratch_operands = 0 : i64, tpu.core_type = #tpu.core_type<tc>, window_params = [{pipeline_mode = #tpu.pipeline_mode<synchronous>, transform_indices = @transform_0, window_bounds = array<i64: 3, 8, 72>}, {pipeline_mode = #tpu.pipeline_mode<synchronous>, transform_indices = @transform_1, window_bounds = array<i64: 8, 1>}, {pipeline_mode = #tpu.pipeline_mode<synchronous>, transform_indices = @transform_2, window_bounds = array<i64: 1, 80>}, {transform_indices = @transform_3, window_bounds = array<i64: 1, 1, 8, 110>}, {transform_indices = @transform_4, window_bounds = array<i64: 1, 1, 8, 80>}, {transform_indices = @transform_5, window_bounds = array<i64: 1, 1, 8, 1>}, {transform_indices = @transform_6, window_bounds = array<i64: 1, 1, 8, 1>}]} {
    %c0 = arith.constant 0 : index
    %c0_0 = arith.constant 0 : index
    %c0_1 = arith.constant 0 : index
    %c0_2 = arith.constant 0 : index
    %0 = vector.load %arg6[%c0, %c0_0, %c0_1, %c0_2] : memref<1x1x8x110xf32, #tpu.memory_space<vmem>>, vector<1x1x8x110xf32>
    %1 = vector.shape_cast %0 : vector<1x1x8x110xf32> to vector<8x110xf32>
    %2 = vector.extract_strided_slice %1 {offsets = [0, 0], sizes = [8, 80], strides = [1, 1]} : vector<8x110xf32> to vector<8x80xf32>
    %3 = vector.extract_strided_slice %1 {offsets = [0, 1], sizes = [8, 80], strides = [1, 1]} : vector<8x110xf32> to vector<8x80xf32>
    %4 = vector.extract_strided_slice %1 {offsets = [0, 2], sizes = [8, 80], strides = [1, 1]} : vector<8x110xf32> to vector<8x80xf32>
    %5 = vector.extract_strided_slice %1 {offsets = [0, 10], sizes = [8, 80], strides = [1, 1]} : vector<8x110xf32> to vector<8x80xf32>
    %6 = vector.extract_strided_slice %1 {offsets = [0, 11], sizes = [8, 80], strides = [1, 1]} : vector<8x110xf32> to vector<8x80xf32>
    %7 = vector.extract_strided_slice %1 {offsets = [0, 12], sizes = [8, 80], strides = [1, 1]} : vector<8x110xf32> to vector<8x80xf32>
    %8 = vector.extract_strided_slice %1 {offsets = [0, 20], sizes = [8, 80], strides = [1, 1]} : vector<8x110xf32> to vector<8x80xf32>
    %9 = vector.extract_strided_slice %1 {offsets = [0, 21], sizes = [8, 80], strides = [1, 1]} : vector<8x110xf32> to vector<8x80xf32>
    %10 = vector.extract_strided_slice %1 {offsets = [0, 22], sizes = [8, 80], strides = [1, 1]} : vector<8x110xf32> to vector<8x80xf32>
    %11 = tpu.concatenate %2, %3, %4, %5, %6, %7, %8, %9, %10 in 0 : vector<8x80xf32>, vector<8x80xf32>, vector<8x80xf32>, vector<8x80xf32>, vector<8x80xf32>, vector<8x80xf32>, vector<8x80xf32>, vector<8x80xf32>, vector<8x80xf32> -> vector<72x80xf32>
    %12 = arith.index_cast %arg2 : i32 to index
    %c0_3 = arith.constant 0 : index
    %c0_4 = arith.constant 0 : index
    %13 = vector.load %arg3[%12, %c0_3, %c0_4] : memref<3x8x72xf32, #tpu.memory_space<vmem>>, vector<1x8x72xf32>
    %14 = vector.shape_cast %13 : vector<1x8x72xf32> to vector<8x72xf32>
    %cst = arith.constant dense<0.000000e+00> : vector<8x80xf32>
    %15 = tpu.matmul %14, %11, %cst {dimension_numbers = #tpu.dot_dimension_numbers<[1], [0], [0], [1], [0, 0, 1, 1], [], []>} : vector<8x72xf32>, vector<72x80xf32>, vector<8x80xf32> -> vector<8x80xf32>
    %c0_i32 = arith.constant 0 : i32
    %16 = arith.cmpi eq, %arg2, %c0_i32 : i32
    %17 = arith.extui %16 : i1 to i32
    %c0_i32_5 = arith.constant 0 : i32
    %18 = arith.cmpi ne, %17, %c0_i32_5 : i32
    scf.if %18 {
      %c0_9 = arith.constant 0 : index
      %c0_10 = arith.constant 0 : index
      %25 = vector.load %arg4[%c0_9, %c0_10] : memref<8x1xf32, #tpu.memory_space<vmem>>, vector<8x1xf32>
      %26 = vector.broadcast %25 : vector<8x1xf32> to vector<8x80xf32>
      %27 = arith.addf %15, %26 : vector<8x80xf32>
      %c0_11 = arith.constant 0 : index
      %c0_12 = arith.constant 0 : index
      %c0_13 = arith.constant 0 : index
      %c0_14 = arith.constant 0 : index
      %28 = vector.load %arg7[%c0_11, %c0_12, %c0_13, %c0_14] : memref<1x1x8x80xf32, #tpu.memory_space<vmem>>, vector<1x1x8x80xf32>
      %29 = vector.shape_cast %28 : vector<1x1x8x80xf32> to vector<8x80xf32>
      %30 = vector.shape_cast %27 : vector<8x80xf32> to vector<1x1x8x80xf32>
      tpu.vector_store %arg7[%c0_11, %c0_12, %c0_13, %c0_14], %30 {strides = array<i32>} : memref<1x1x8x80xf32, #tpu.memory_space<vmem>>, vector<1x1x8x80xf32>,
    } else {
    }
    %c0_i32_6 = arith.constant 0 : i32
    %19 = arith.cmpi sgt, %arg2, %c0_i32_6 : i32
    %20 = arith.extui %19 : i1 to i32
    %c0_i32_7 = arith.constant 0 : i32
    %21 = arith.cmpi ne, %20, %c0_i32_7 : i32
    scf.if %21 {
      %c0_9 = arith.constant 0 : index
      %c0_10 = arith.constant 0 : index
      %c0_11 = arith.constant 0 : index
      %c0_12 = arith.constant 0 : index
      %25 = vector.load %arg7[%c0_9, %c0_10, %c0_11, %c0_12] : memref<1x1x8x80xf32, #tpu.memory_space<vmem>>, vector<1x1x8x80xf32>
      %26 = vector.shape_cast %25 : vector<1x1x8x80xf32> to vector<8x80xf32>
      %27 = arith.addf %26, %15 : vector<8x80xf32>
      %c0_13 = arith.constant 0 : index
      %c0_14 = arith.constant 0 : index
      %c0_15 = arith.constant 0 : index
      %c0_16 = arith.constant 0 : index
      %28 = vector.load %arg7[%c0_13, %c0_14, %c0_15, %c0_16] : memref<1x1x8x80xf32, #tpu.memory_space<vmem>>, vector<1x1x8x80xf32>
      %29 = vector.shape_cast %28 : vector<1x1x8x80xf32> to vector<8x80xf32>
      %30 = vector.shape_cast %27 : vector<8x80xf32> to vector<1x1x8x80xf32>
      tpu.vector_store %arg7[%c0_13, %c0_14, %c0_15, %c0_16], %30 {strides = array<i32>} : memref<1x1x8x80xf32, #tpu.memory_space<vmem>>, vector<1x1x8x80xf32>,
    } else {
    }
    %c2_i32 = arith.constant 2 : i32
    %22 = arith.cmpi eq, %arg2, %c2_i32 : i32
    %23 = arith.extui %22 : i1 to i32
    %c0_i32_8 = arith.constant 0 : i32
    %24 = arith.cmpi ne, %23, %c0_i32_8 : i32
    scf.if %24 {
      %c0_9 = arith.constant 0 : index
      %c0_10 = arith.constant 0 : index
      %c0_11 = arith.constant 0 : index
      %c0_12 = arith.constant 0 : index
      %25 = vector.load %arg7[%c0_9, %c0_10, %c0_11, %c0_12] : memref<1x1x8x80xf32, #tpu.memory_space<vmem>>, vector<1x1x8x80xf32>
      %26 = vector.shape_cast %25 : vector<1x1x8x80xf32> to vector<8x80xf32>
      %c0_13 = arith.constant 0 : index
      %c0_14 = arith.constant 0 : index
      %27 = vector.load %arg5[%c0_13, %c0_14] : memref<1x80xf32, #tpu.memory_space<vmem>>, vector<1x80xf32>
      %cst_15 = arith.constant 0.000000e+00 : f32
      %28 = vector.broadcast %cst_15 : f32 to vector<1x80xf32>
      %29 = arith.cmpf ogt, %27, %28 : vector<1x80xf32>
      %cst_16 = arith.constant 0.000000e+00 : f32
      %30 = vector.shape_cast %29 : vector<1x80xi1> to vector<1x80xi1>
      %31 = vector.broadcast %30 : vector<1x80xi1> to vector<8x80xi1>
      %32 = vector.broadcast %cst_16 : f32 to vector<8x80xf32>
      %33 = arith.select %31, %26, %32 : vector<8x80xi1>, vector<8x80xf32>
      %cst_17 = arith.constant dense<0.000000e+00> : vector<8xf32>
      %34 = vector.multi_reduction <add>, %33, %cst_17 [1] : vector<8x80xf32> to vector<8xf32>
      %35 = vector.shape_cast %34 : vector<8xf32> to vector<8x1xf32>
      %c0_18 = arith.constant 0 : index
      %c0_19 = arith.constant 0 : index
      %c0_20 = arith.constant 0 : index
      %c0_21 = arith.constant 0 : index
      %36 = vector.load %arg8[%c0_18, %c0_19, %c0_20, %c0_21] : memref<1x1x8x1xf32, #tpu.memory_space<vmem>>, vector<1x1x8x1xf32>
      %37 = vector.shape_cast %36 : vector<1x1x8x1xf32> to vector<8x1xf32>
      %38 = vector.shape_cast %35 : vector<8x1xf32> to vector<1x1x8x1xf32>
      tpu.vector_store %arg8[%c0_18, %c0_19, %c0_20, %c0_21], %38 {strides = array<i32>} : memref<1x1x8x1xf32, #tpu.memory_space<vmem>>, vector<1x1x8x1xf32>,
      %39 = arith.mulf %33, %33 : vector<8x80xf32>
      %cst_22 = arith.constant dense<0.000000e+00> : vector<8xf32>
      %40 = vector.multi_reduction <add>, %39, %cst_22 [1] : vector<8x80xf32> to vector<8xf32>
      %41 = vector.shape_cast %40 : vector<8xf32> to vector<8x1xf32>
      %c0_23 = arith.constant 0 : index
      %c0_24 = arith.constant 0 : index
      %c0_25 = arith.constant 0 : index
      %c0_26 = arith.constant 0 : index
      %42 = vector.load %arg9[%c0_23, %c0_24, %c0_25, %c0_26] : memref<1x1x8x1xf32, #tpu.memory_space<vmem>>, vector<1x1x8x1xf32>
      %43 = vector.shape_cast %42 : vector<1x1x8x1xf32> to vector<8x1xf32>
      %44 = vector.shape_cast %41 : vector<8x1xf32> to vector<1x1x8x1xf32>
      tpu.vector_store %arg9[%c0_23, %c0_24, %c0_25, %c0_26], %44 {strides = array<i32>} : memref<1x1x8x1xf32, #tpu.memory_space<vmem>>, vector<1x1x8x1xf32>,
    } else {
    }
    return
  }
  func.func @transform_0(%arg0: i32, %arg1: i32, %arg2: i32) -> (i32, i32, i32) {
    %c0_i32 = arith.constant 0 : i32
    %c0_i32_0 = arith.constant 0 : i32
    %c0_i32_1 = arith.constant 0 : i32
    %c0_i32_2 = arith.constant 0 : i32
    return %c0_i32, %c0_i32_0, %c0_i32_1 : i32, i32, i32
  }
  func.func @transform_1(%arg0: i32, %arg1: i32, %arg2: i32) -> (i32, i32) {
    %c0_i32 = arith.constant 0 : i32
    %c0_i32_0 = arith.constant 0 : i32
    %c0_i32_1 = arith.constant 0 : i32
    return %c0_i32, %c0_i32_0 : i32, i32
  }
  func.func @transform_2(%arg0: i32, %arg1: i32, %arg2: i32) -> (i32, i32) {
    %c0_i32 = arith.constant 0 : i32
    %c0_i32_0 = arith.constant 0 : i32
    %c0_i32_1 = arith.constant 0 : i32
    return %c0_i32, %c0_i32_0 : i32, i32
  }
  func.func @transform_3(%arg0: i32, %arg1: i32, %arg2: i32) -> (i32, i32, i32, i32) {
    %0 = arith.addi %arg0, %arg2 : i32
    %c0_i32 = arith.constant 0 : i32
    %c0_i32_0 = arith.constant 0 : i32
    %c0_i32_1 = arith.constant 0 : i32
    return %arg1, %0, %c0_i32, %c0_i32_0 : i32, i32, i32, i32
  }
  func.func @transform_4(%arg0: i32, %arg1: i32, %arg2: i32) -> (i32, i32, i32, i32) {
    %c0_i32 = arith.constant 0 : i32
    %c0_i32_0 = arith.constant 0 : i32
    %c0_i32_1 = arith.constant 0 : i32
    return %arg1, %arg0, %c0_i32, %c0_i32_0 : i32, i32, i32, i32
  }
  func.func @transform_5(%arg0: i32, %arg1: i32, %arg2: i32) -> (i32, i32, i32, i32) {
    %c0_i32 = arith.constant 0 : i32
    %c0_i32_0 = arith.constant 0 : i32
    %c0_i32_1 = arith.constant 0 : i32
    return %arg1, %arg0, %c0_i32, %c0_i32_0 : i32, i32, i32, i32
  }
  func.func @transform_6(%arg0: i32, %arg1: i32, %arg2: i32) -> (i32, i32, i32, i32) {
    %c0_i32 = arith.constant 0 : i32
    %c0_i32_0 = arith.constant 0 : i32
    %c0_i32_1 = arith.constant 0 : i32
    return %arg1, %arg0, %c0_i32, %c0_i32_0 : i32, i32, i32, i32
  }
}

module attributes {stable_mosaic.version = 11 : i64} {
  func.func @_gn_relu_kernel(%arg0: i32, %arg1: i32, %arg2: i32, %arg3: i32, %arg4: memref<1x1x1x4x80xf32, #tpu.memory_space<vmem>>, %arg5: memref<1x1x4x1xf32, #tpu.memory_space<vmem>>, %arg6: memref<1x1x4x1xf32, #tpu.memory_space<vmem>>, %arg7: memref<1x1x1x4x80xf32, #tpu.memory_space<vmem>>) attributes {dimension_semantics = [#tpu.dimension_semantics<parallel>, #tpu.dimension_semantics<parallel>, #tpu.dimension_semantics<parallel>, #tpu.dimension_semantics<parallel>], iteration_bounds = array<i64: 8, 2, 2, 1>, scalar_prefetch = 0 : i64, scratch_operands = 0 : i64, tpu.core_type = #tpu.core_type<tc>, window_params = [{transform_indices = @transform_0, window_bounds = array<i64: 1, 1, 1, 4, 80>}, {transform_indices = @transform_1, window_bounds = array<i64: 1, 1, 4, 1>}, {transform_indices = @transform_2, window_bounds = array<i64: 1, 1, 4, 1>}, {transform_indices = @transform_3, window_bounds = array<i64: 1, 1, 1, 4, 80>}]} {
    %c0 = arith.constant 0 : index
    %c0_0 = arith.constant 0 : index
    %c0_1 = arith.constant 0 : index
    %c0_2 = arith.constant 0 : index
    %c0_3 = arith.constant 0 : index
    %0 = vector.load %arg4[%c0, %c0_0, %c0_1, %c0_2, %c0_3] : memref<1x1x1x4x80xf32, #tpu.memory_space<vmem>>, vector<1x1x1x4x80xf32>
    %1 = vector.shape_cast %0 : vector<1x1x1x4x80xf32> to vector<4x80xf32>
    %c0_4 = arith.constant 0 : index
    %c0_5 = arith.constant 0 : index
    %c0_6 = arith.constant 0 : index
    %c0_7 = arith.constant 0 : index
    %2 = vector.load %arg5[%c0_4, %c0_5, %c0_6, %c0_7] : memref<1x1x4x1xf32, #tpu.memory_space<vmem>>, vector<1x1x4x1xf32>
    %3 = vector.shape_cast %2 : vector<1x1x4x1xf32> to vector<4x1xf32>
    %4 = vector.broadcast %3 : vector<4x1xf32> to vector<4x80xf32>
    %5 = arith.mulf %1, %4 : vector<4x80xf32>
    %c0_8 = arith.constant 0 : index
    %c0_9 = arith.constant 0 : index
    %c0_10 = arith.constant 0 : index
    %c0_11 = arith.constant 0 : index
    %6 = vector.load %arg6[%c0_8, %c0_9, %c0_10, %c0_11] : memref<1x1x4x1xf32, #tpu.memory_space<vmem>>, vector<1x1x4x1xf32>
    %7 = vector.shape_cast %6 : vector<1x1x4x1xf32> to vector<4x1xf32>
    %8 = vector.broadcast %7 : vector<4x1xf32> to vector<4x80xf32>
    %9 = arith.addf %5, %8 : vector<4x80xf32>
    %cst = arith.constant 0.000000e+00 : f32
    %10 = vector.broadcast %cst : f32 to vector<4x80xf32>
    %11 = arith.maximumf %9, %10 : vector<4x80xf32>
    %c0_12 = arith.constant 0 : index
    %c0_13 = arith.constant 0 : index
    %c0_14 = arith.constant 0 : index
    %c0_15 = arith.constant 0 : index
    %c0_16 = arith.constant 0 : index
    %12 = vector.load %arg7[%c0_12, %c0_13, %c0_14, %c0_15, %c0_16] : memref<1x1x1x4x80xf32, #tpu.memory_space<vmem>>, vector<1x1x1x4x80xf32>
    %13 = vector.shape_cast %12 : vector<1x1x1x4x80xf32> to vector<4x80xf32>
    %14 = vector.shape_cast %11 : vector<4x80xf32> to vector<1x1x1x4x80xf32>
    tpu.vector_store %arg7[%c0_12, %c0_13, %c0_14, %c0_15, %c0_16], %14 {strides = array<i32>} : memref<1x1x1x4x80xf32, #tpu.memory_space<vmem>>, vector<1x1x1x4x80xf32>,
    return
  }
  func.func @transform_0(%arg0: i32, %arg1: i32, %arg2: i32, %arg3: i32) -> (i32, i32, i32, i32, i32) {
    %c0_i32 = arith.constant 0 : i32
    %c0_i32_0 = arith.constant 0 : i32
    return %arg1, %arg0, %arg2, %c0_i32, %arg3 : i32, i32, i32, i32, i32
  }
  func.func @transform_1(%arg0: i32, %arg1: i32, %arg2: i32, %arg3: i32) -> (i32, i32, i32, i32) {
    %c0_i32 = arith.constant 0 : i32
    %c0_i32_0 = arith.constant 0 : i32
    %c0_i32_1 = arith.constant 0 : i32
    return %arg1, %arg2, %c0_i32, %c0_i32_0 : i32, i32, i32, i32
  }
  func.func @transform_2(%arg0: i32, %arg1: i32, %arg2: i32, %arg3: i32) -> (i32, i32, i32, i32) {
    %c0_i32 = arith.constant 0 : i32
    %c0_i32_0 = arith.constant 0 : i32
    %c0_i32_1 = arith.constant 0 : i32
    return %arg1, %arg2, %c0_i32, %c0_i32_0 : i32, i32, i32, i32
  }
  func.func @transform_3(%arg0: i32, %arg1: i32, %arg2: i32, %arg3: i32) -> (i32, i32, i32, i32, i32) {
    %c0_i32 = arith.constant 0 : i32
    %c0_i32_0 = arith.constant 0 : i32
    return %arg1, %arg0, %arg2, %c0_i32, %arg3 : i32, i32, i32, i32, i32
  }
}

</mosaic_0001>

<llo_original>
// kernel: deconv3d_block_forward.3
$region0: #{deconv3d_block_forward.3}
  #allocation0 [shape = 'u32[]', space=smem, size = 0x4, offset = 0x4, fixed_abs, tag = 'smem constant byte address 0x4 - core index']
  #allocation1 [shape = 'u32[144,128]{1,0:T(1,128)}', space=vmem, size = 0x12000, scoped, tag = 'internal scratch']
  %s0 = inlined_call_operand.vmem [shape: f32[64,4], index: 0, kind: input, shape index: {}]
  %s1 = inlined_call_operand.vmem [shape: f32[64,1], index: 1, kind: input, shape index: {}]
  %s2 = inlined_call_operand.vmem [shape: f32[2,4,64], index: 2, kind: input, shape index: {}]
  %s3 = inlined_call_operand.vmem [shape: f32[2,64,64], index: 3, kind: output, shape index: {}]
  %s4 = sld [smem:[#allocation0]]
  $region45: #{deconv3d_block_forward.3} parent=0
    _
  %s6 = ssub.s32 1, %s4
  %s7 = scalar_select 0, %s6, %s4
  loop: start=0, step=1, limit=4
  $region2: #{deconv3d_block_forward.3} parent=0 // loop_pre_header
    _
  $region3: #{deconv3d_block_forward.3} parent=0 // loop_header
    %s9 = sphi 0, %s13
    %p10 = scmp.ge.s32.totalorder %s9, 4
    %s16 = sphi 0, %s28
    %s17 = sphi 0, %s24
    %s18 = sphi 0, %s16
    %s19 = sphi 0, %s17
    %s20 = sphi 0, %s18
    %s21 = sphi 0, %s19
    %s29 = sphi 0, %s29
    %s31 = sphi 0, %s29
    %s32 = sphi 0, %s31
    %s46 = sphi 0, %s32
    %s50 = sphi 0, %s50
    %s52 = sphi 0, %s50
    %s53 = sphi 0, %s52
    %s67 = sphi 0, %s53
    %s75 = sphi 0, %s77
    %s78 = sphi 0, %s75
    %s79 = sphi 0, %s78
    %s95 = sphi 0, %s79
    %s103 = sphi 0, %s105
    %s106 = sphi 0, %s103
    %s107 = sphi 0, %s106
    %s123 = sphi 0, %s107
  $region4: #{deconv3d_block_forward.3} parent=0 // loop_header_branch
    %12 = sbr.rel (%p10) target = $region8
  $region5: #{deconv3d_block_forward.3} parent=0 // loop_body
    %s14 = ssub.s32 %s9, 1
    %s15 = ssub.s32 %s9, 2
    %s22 = sadd.s32 1, %s17
    %p23 = scmp.ge.s32.totalorder %s22, 2
    %s24 = scalar_select %p23, 0, %s22
    %s25 = sadd.s32 1, %s16
    %s26 = scalar_select %p23, %s25, %s16
    %p27 = scmp.ge.s32.totalorder %s26, 1
    %s28 = scalar_select %p27, 0, %s26
    %s30 = sadd.s32 %s29, 1
    %p33 = scmp.eq.s32.totalorder %s9, 1
    %p34 = scmp.ne.s32.totalorder %s29, %s31
    %p35 = scmp.eq.s32.totalorder %s9, 0
    %p36 = por %p34, %p35
    %p37 = scmp.ne.s32.totalorder %s29, %s31
    %p38 = scmp.eq.s32.totalorder %s14, 1
    %p39 = por %p37, %p38
    %p40 = scmp.ne.s32.totalorder %s31, %s32
    %p41 = scmp.eq.s32.totalorder %s14, 0
    %p42 = por %p40, %p41
    %p43 = scmp.ne.s32.totalorder %s31, %s32
    %p44 = scmp.eq.s32.totalorder %s15, 1
    %p45 = por %p43, %p44
    %p47 = scmp.ne.s32.totalorder %s32, %s46
    %p48 = scmp.eq.s32.totalorder %s15, 0
    %p49 = por %p47, %p48
    %s51 = sadd.s32 %s50, 1
    %p54 = scmp.eq.s32.totalorder %s9, 1
    %p55 = scmp.ne.s32.totalorder %s50, %s52
    %p56 = scmp.eq.s32.totalorder %s9, 0
    %p57 = por %p55, %p56
    %p58 = scmp.ne.s32.totalorder %s50, %s52
    %p59 = scmp.eq.s32.totalorder %s14, 1
    %p60 = por %p58, %p59
    %p61 = scmp.ne.s32.totalorder %s52, %s53
    %p62 = scmp.eq.s32.totalorder %s14, 0
    %p63 = por %p61, %p62
    %p64 = scmp.ne.s32.totalorder %s52, %s53
    %p65 = scmp.eq.s32.totalorder %s15, 1
    %p66 = por %p64, %p65
    %p68 = scmp.ne.s32.totalorder %s53, %s67
    %p69 = scmp.eq.s32.totalorder %s15, 0
    %p70 = por %p68, %p69
    %s71 = ssub.s32 %s17, %s24
    %s72 = ssub.s32 %s16, %s28
    %s73 = sor.u32 %s71, %s72
    %p74 = scmp.eq.s32.totalorder %s73, 0
    %s76 = sadd.s32 %s75, 1
    %s77 = scalar_select %p74, %s75, %s76
    %p80 = pneg %p74
    %p81 = scmp.eq.s32.totalorder %s9, 1
    %p82 = por %p80, %p81
    %p83 = scmp.ne.s32.totalorder %s75, %s78
    %p84 = scmp.eq.s32.totalorder %s9, 0
    %p85 = por %p83, %p84
    %p86 = scmp.ne.s32.totalorder %s75, %s78
    %p87 = scmp.eq.s32.totalorder %s14, 1
    %p88 = por %p86, %p87
    %p89 = scmp.ne.s32.totalorder %s78, %s79
    %p90 = scmp.eq.s32.totalorder %s14, 0
    %p91 = por %p89, %p90
    %p92 = scmp.ne.s32.totalorder %s78, %s79
    %p93 = scmp.eq.s32.totalorder %s15, 1
    %p94 = por %p92, %p93
    %p96 = scmp.ne.s32.totalorder %s79, %s95
    %p97 = scmp.eq.s32.totalorder %s15, 0
    %p98 = por %p96, %p97
    %s99 = ssub.s32 %s17, %s24
    %s100 = ssub.s32 %s16, %s28
    %s101 = sor.u32 %s99, %s100
    %p102 = scmp.eq.s32.totalorder %s101, 0
    %s104 = sadd.s32 %s103, 1
    %s105 = scalar_select %p102, %s103, %s104
    %p108 = pneg %p102
    %p109 = scmp.eq.s32.totalorder %s9, 1
    %p110 = por %p108, %p109
    %p111 = scmp.ne.s32.totalorder %s103, %s106
    %p112 = scmp.eq.s32.totalorder %s9, 0
    %p113 = por %p111, %p112
    %p114 = scmp.ne.s32.totalorder %s103, %s106
    %p115 = scmp.eq.s32.totalorder %s14, 1
    %p116 = por %p114, %p115
    %p117 = scmp.ne.s32.totalorder %s106, %s107
    %p118 = scmp.eq.s32.totalorder %s14, 0
    %p119 = por %p117, %p118
    %p120 = scmp.ne.s32.totalorder %s106, %s107
    %p121 = scmp.eq.s32.totalorder %s15, 1
    %p122 = por %p120, %p121
    %p124 = scmp.ne.s32.totalorder %s107, %s123
    %p125 = scmp.eq.s32.totalorder %s15, 0
    %p126 = por %p124, %p125
    %p127 = scmp.le.s32.totalorder 1, %s9
    %p128 = scmp.lt.s32.totalorder %s9, 3
    %p129 = pnand %p127, %p128
    %p130 = pneg %p129
    // Predicated region
    $region9: #{deconv3d_block_forward.3} parent=5 // pred_check
      _
    $region10: #{deconv3d_block_forward.3} parent=5 // pred_check_branch
      %132 = sbr.rel (%p129) target = $region12
    $region11: #{deconv3d_block_forward.3} parent=5 // pred_region
      %s133 = ssub.s32 %s9, 1
      // Predicated region
      $region13: #{deconv3d_block_forward.3} parent=11 // pred_check
        %p134 = pneg %p42
      $region14: #{deconv3d_block_forward.3} parent=11 // pred_check_branch
        %136 = sbr.rel (%p134) target = $region16
      $region15: #{deconv3d_block_forward.3} parent=11 // pred_region
        _
      $region16: #{deconv3d_block_forward.3} parent=11 // pred_fallthru
        _
      // Predicated region
      $region17: #{deconv3d_block_forward.3} parent=11 // pred_check
        %p137 = pneg %p63
      $region18: #{deconv3d_block_forward.3} parent=11 // pred_check_branch
        %139 = sbr.rel (%p137) target = $region20
      $region19: #{deconv3d_block_forward.3} parent=11 // pred_region
        _
      $region20: #{deconv3d_block_forward.3} parent=11 // pred_fallthru
        _
    $region12: #{deconv3d_block_forward.3} parent=5 // pred_fallthru
      _
    %p140 = scmp.lt.s32.totalorder %s9, 2
    // Predicated region
    $region21: #{deconv3d_block_forward.3} parent=5 // pred_check
      %p141 = pneg %p140
    $region22: #{deconv3d_block_forward.3} parent=5 // pred_check_branch
      %143 = sbr.rel (%p141) target = $region24
    $region23: #{deconv3d_block_forward.3} parent=5 // pred_region
      // Predicated region
      $region25: #{deconv3d_block_forward.3} parent=23 // pred_check
        %p144 = pneg %p85
      $region26: #{deconv3d_block_forward.3} parent=23 // pred_check_branch
        %146 = sbr.rel (%p144) target = $region28
      $region27: #{deconv3d_block_forward.3} parent=23 // pred_region
        %p147 = scmp.lt.s32.totalorder %s17, 1
        %s148 = scalar_select %p147, %s17, 1
        %p149 = scmp.lt.s32.totalorder %s16, 0
        %s150 = scalar_select %p149, %s16, 0
        %s151 = sadd.s32 %s150, %s148
        %s152 = smul.addr %s151, 4
        %s153 = scalar_lea.vmem %s2, %s152
      $region28: #{deconv3d_block_forward.3} parent=23 // pred_fallthru
        _
    $region24: #{deconv3d_block_forward.3} parent=5 // pred_fallthru
      _
    %p154 = scmp.le.s32.totalorder 1, %s9
    %p155 = scmp.lt.s32.totalorder %s9, 3
    %p156 = pnand %p154, %p155
    %p157 = pneg %p156
    // Predicated region
    $region29: #{deconv3d_block_forward.3} parent=5 // pred_check
      _
    $region30: #{deconv3d_block_forward.3} parent=5 // pred_check_branch
      %159 = sbr.rel (%p156) target = $region32
    $region31: #{deconv3d_block_forward.3} parent=5 // pred_region
      %s160 = ssub.s32 %s9, 1
      %p161 = pneg %p42
      %p162 = pneg %p39
      %p163 = pneg %p63
      %p164 = pneg %p60
      %p165 = scmp.lt.s32.totalorder %s19, 1
      %s166 = scalar_select %p165, %s19, 1
      %p167 = scmp.lt.s32.totalorder %s18, 0
      %s168 = scalar_select %p167, %s18, 0
      %s169 = sadd.s32 %s168, %s166
      %s170 = smul.addr %s169, 4
      %s171 = scalar_lea.vmem %s2, %s170
      %p172 = pneg %p91
      %p173 = pneg %p88
      %p174 = pneg %p119
      %p175 = pneg %p116
      %p176 = scmp.lt.s32.totalorder %s19, 1
      %s177 = scalar_select %p176, %s19, 1
      %p178 = scmp.lt.s32.totalorder %s18, 0
      %s179 = scalar_select %p178, %s18, 0
      %s180 = smul.addr %s177, 8
      %s181 = sadd.s32 %s179, %s180
      %s182 = smul.addr %s181, 8
      %s183 = scalar_lea.vmem %s3, %s182
      %p184 = scmp.lt.s32.totalorder %s19, 1
      %s185 = scalar_select %p184, %s19, 1
      %p186 = scmp.lt.s32.totalorder %s18, 0
      %s187 = scalar_select %p186, %s18, 0
      %s188 = sadd.s32 %s187, %s185
      %s189 = smul.addr %s188, 4
      %s190 = scalar_lea.vmem %s2, %s189
      %p191 = scmp.lt.s32.totalorder %s19, 1
      %s192 = scalar_select %p191, %s19, 1
      %p193 = scmp.lt.s32.totalorder %s18, 0
      %s194 = scalar_select %p193, %s18, 0
      %s195 = smul.addr %s192, 8
      %s196 = sadd.s32 %s194, %s195
      %s197 = smul.addr %s196, 8
      %s198 = scalar_lea.vmem %s3, %s197
      %v199 = vld [vmem:[%s0] sm:$0xff]
      %v200 = vld [vmem:[%s0 + $0x8] sm:$0xff]
      %v201 = vld [vmem:[%s0 + $0x10] sm:$0xff]
      %v202 = vld [vmem:[%s0 + $0x18] sm:$0xff]
      %v203 = vld [vmem:[%s0 + $0x20] sm:$0xff]
      %v204 = vld [vmem:[%s0 + $0x28] sm:$0xff]
      %v205 = vld [vmem:[%s0 + $0x30] sm:$0xff]
      %v206 = vld [vmem:[%s0 + $0x38] sm:$0xff]
      %v207 = vld [vmem:[%s190] sm:$0xf]
      %v208 = vld [vmem:[%s1] sm:$0xff]
      %v209 = vld [vmem:[%s1 + $0x8] sm:$0xff]
      %v210 = vld [vmem:[%s1 + $0x10] sm:$0xff]
      %v211 = vld [vmem:[%s1 + $0x18] sm:$0xff]
      %v212 = vld [vmem:[%s1 + $0x20] sm:$0xff]
      %v213 = vld [vmem:[%s1 + $0x28] sm:$0xff]
      %v214 = vld [vmem:[%s1 + $0x30] sm:$0xff]
      %v215 = vld [vmem:[%s1 + $0x38] sm:$0xff]
      %217 = vset.pattern.permute.xlu0 0
      %218 = vperm.xlu0 %217, %v208
      %v219 = vpop.permute.xlu0 %218
      %222 = vset.pattern.permute.xlu0 0
      %223 = vperm.xlu0 %222, %v209
      %v224 = vpop.permute.xlu0 %223
      %227 = vset.pattern.permute.xlu0 0
      %228 = vperm.xlu0 %227, %v210
      %v229 = vpop.permute.xlu0 %228
      %232 = vset.pattern.permute.xlu0 0
      %233 = vperm.xlu0 %232, %v211
      %v234 = vpop.permute.xlu0 %233
      %237 = vset.pattern.permute.xlu0 0
      %238 = vperm.xlu0 %237, %v212
      %v239 = vpop.permute.xlu0 %238
      %242 = vset.pattern.permute.xlu0 0
      %243 = vperm.xlu0 %242, %v213
      %v244 = vpop.permute.xlu0 %243
      %247 = vset.pattern.permute.xlu0 0
      %248 = vperm.xlu0 %247, %v214
      %v249 = vpop.permute.xlu0 %248
      %252 = vset.pattern.permute.xlu0 0
      %253 = vperm.xlu0 %252, %v215
      %v254 = vpop.permute.xlu0 %253
      %vm256 = vcmask 31744
      %v258 = vsel %vm256, %v199, 0
      %v261 = vsel %vm256, %v200, 0
      %v264 = vsel %vm256, %v201, 0
      %v267 = vsel %vm256, %v202, 0
      %v270 = vsel %vm256, %v203, 0
      %v273 = vsel %vm256, %v204, 0
      %v276 = vsel %vm256, %v205, 0
      %v279 = vsel %vm256, %v206, 0
      %vm281 = vcmask 1043456
      %v283 = vsel %vm281, %v207, 0
      %285 = vmatprep.subr.mxu0 0.0
      %286 = vmatpush1.msra.mxu0 %v283
      %287 = vmatprep.subr.mxu0 0.0
      %288 = vmatpush1.msra.mxu0 0.0
      %289 = vmatprep.subr.mxu0 0.0
      %290 = vmatpush1.msra.mxu0 0.0
      %291 = vmatprep.subr.mxu0 0.0
      %292 = vmatpush1.msra.mxu0 0.0
      %293 = vmatprep.subr.mxu0 0.0
      %294 = vmatpush1.msra.mxu0 0.0
      %295 = vmatprep.subr.mxu0 0.0
      %296 = vmatpush1.msra.mxu0 0.0
      %297 = vmatprep.subr.mxu0 0.0
      %298 = vmatpush1.msra.mxu0 0.0
      %299 = vmatprep.subr.mxu0 0.0
      %300 = vmatpush1.msra.mxu0 0.0
      %301 = vmatprep.subr.mxu0 0.0
      %302 = vmatpush1.msra.mxu0 0.0
      %303 = vmatprep.subr.mxu0 0.0
      %304 = vmatpush1.msra.mxu0 0.0
      %305 = vmatprep.subr.mxu0 0.0
      %306 = vmatpush1.msra.mxu0 0.0
      %307 = vmatprep.subr.mxu0 0.0
      %308 = vmatpush1.msra.mxu0 0.0
      %309 = vmatprep.subr.mxu0 0.0
      %310 = vmatpush1.msra.mxu0 0.0
      %311 = vmatprep.subr.mxu0 0.0
      %312 = vmatpush1.msra.mxu0 0.0
      %313 = vmatprep.subr.mxu0 0.0
      %314 = vmatpush1.msra.mxu0 0.0
      %315 = vmatprep.subr.mxu0 0.0
      %316 = vmatpush1.msra.mxu0 0.0
      %317 = vmatprep.subr.mxu0 0.0
      %318 = vmatpush1.msra.mxu0 0.0
      %319 = vmatprep.subr.mxu0 0.0
      %320 = vmatpush1.msra.mxu0 0.0
      %321 = vmatprep.subr.mxu0 0.0
      %322 = vmatpush1.msra.mxu0 0.0
      %323 = vmatprep.subr.mxu0 0.0
      %324 = vmatpush1.msra.mxu0 0.0
      %325 = vmatprep.subr.mxu0 0.0
      %326 = vmatpush1.msra.mxu0 0.0
      %327 = vmatprep.subr.mxu0 0.0
      %328 = vmatpush1.msra.mxu0 0.0
      %329 = vmatprep.subr.mxu0 0.0
      %330 = vmatpush1.msra.mxu0 0.0
      %331 = vmatprep.subr.mxu0 0.0
      %332 = vmatpush1.msra.mxu0 0.0
      %333 = vmatprep.subr.mxu0 0.0
      %334 = vmatpush1.msra.mxu0 0.0
      %335 = vmatprep.subr.mxu0 0.0
      %336 = vmatpush1.msra.mxu0 0.0
      %337 = vmatprep.subr.mxu0 0.0
      %338 = vmatpush1.msra.mxu0 0.0
      %339 = vmatprep.subr.mxu0 0.0
      %340 = vmatpush1.msra.mxu0 0.0
      %341 = vmatprep.subr.mxu0 0.0
      %342 = vmatpush1.msra.mxu0 0.0
      %343 = vmatprep.subr.mxu0 0.0
      %344 = vmatpush1.msra.mxu0 0.0
      %345 = vmatprep.subr.mxu0 0.0
      %346 = vmatpush1.msra.mxu0 0.0
      %347 = vmatprep.subr.mxu0 0.0
      %348 = vmatpush1.msra.mxu0 0.0
      %349 = vmatprep.mubr.f32.mxu0 0.0
      %350 = vmatmul.mubr.f32.gmra.mrb[0].mxu0 %v258
      %v351 = vpop.f32.mrb[0].mxu0
      %v352 = vadd.f32 %v219, %v351
      %v353 = vpop.f32.mrb[0].mxu0
      %354 = vmatprep.mubr.f32.mxu0 0.0
      %355 = vmatmul.mubr.f32.gmra.mrb[0].mxu0 %v261
      %v356 = vpop.f32.mrb[0].mxu0
      %v357 = vadd.f32 %v224, %v356
      %v358 = vpop.f32.mrb[0].mxu0
      %359 = vmatprep.mubr.f32.mxu0 0.0
      %360 = vmatmul.mubr.f32.gmra.mrb[0].mxu0 %v264
      %v361 = vpop.f32.mrb[0].mxu0
      %v362 = vadd.f32 %v229, %v361
      %v363 = vpop.f32.mrb[0].mxu0
      %364 = vmatprep.mubr.f32.mxu0 0.0
      %365 = vmatmul.mubr.f32.gmra.mrb[0].mxu0 %v267
      %v366 = vpop.f32.mrb[0].mxu0
      %v367 = vadd.f32 %v234, %v366
      %v368 = vpop.f32.mrb[0].mxu0
      %369 = vmatprep.mubr.f32.mxu0 0.0
      %370 = vmatmul.mubr.f32.gmra.mrb[0].mxu0 %v270
      %v371 = vpop.f32.mrb[0].mxu0
      %v372 = vadd.f32 %v239, %v371
      %v373 = vpop.f32.mrb[0].mxu0
      %374 = vmatprep.mubr.f32.mxu0 0.0
      %375 = vmatmul.mubr.f32.gmra.mrb[0].mxu0 %v273
      %v376 = vpop.f32.mrb[0].mxu0
      %v377 = vadd.f32 %v244, %v376
      %v378 = vpop.f32.mrb[0].mxu0
      %379 = vmatprep.mubr.f32.mxu0 0.0
      %380 = vmatmul.mubr.f32.gmra.mrb[0].mxu0 %v276
      %v381 = vpop.f32.mrb[0].mxu0
      %v382 = vadd.f32 %v249, %v381
      %v383 = vpop.f32.mrb[0].mxu0
      %384 = vmatprep.mubr.f32.mxu0 0.0
      %385 = vmatmul.mubr.f32.gmra.mrb[0].mxu0 %v279
      %v386 = vpop.f32.mrb[0].mxu0
      %v387 = vadd.f32 %v254, %v386
      %v388 = vpop.f32.mrb[0].mxu0
      %389 = vdwg.mxu0
      %vm390 = vcmask 523264
      %391 = vst.msk [vmem:[%s198] sm:$0xff] %vm390, %v352
      %392 = vst.msk [vmem:[%s198 + $0x8] sm:$0xff] %vm390, %v357
      %393 = vst.msk [vmem:[%s198 + $0x10] sm:$0xff] %vm390, %v362
      %394 = vst.msk [vmem:[%s198 + $0x18] sm:$0xff] %vm390, %v367
      %395 = vst.msk [vmem:[%s198 + $0x20] sm:$0xff] %vm390, %v372
      %396 = vst.msk [vmem:[%s198 + $0x28] sm:$0xff] %vm390, %v377
      %397 = vst.msk [vmem:[%s198 + $0x30] sm:$0xff] %vm390, %v382
      %398 = vst.msk [vmem:[%s198 + $0x38] sm:$0xff] %vm390, %v387
      %p399 = scmp.lt.s32.totalorder %s19, 1
      %s400 = scalar_select %p399, %s19, 1
      %p401 = scmp.lt.s32.totalorder %s18, 0
      %s402 = scalar_select %p401, %s18, 0
      %s403 = smul.addr %s400, 8
      %s404 = sadd.s32 %s402, %s403
      %s405 = smul.addr %s404, 8
      %s406 = scalar_lea.vmem %s3, %s405
      // Predicated region
      $region33: #{deconv3d_block_forward.3} parent=31 // pred_check
        %p407 = pneg %p116
      $region34: #{deconv3d_block_forward.3} parent=31 // pred_check_branch
        %409 = sbr.rel (%p407) target = $region36
      $region35: #{deconv3d_block_forward.3} parent=31 // pred_region
        _
      $region36: #{deconv3d_block_forward.3} parent=31 // pred_fallthru
        _
    $region32: #{deconv3d_block_forward.3} parent=5 // pred_fallthru
      _
    %p410 = scmp.le.s32.totalorder 2, %s9
    // Predicated region
    $region37: #{deconv3d_block_forward.3} parent=5 // pred_check
      %p411 = pneg %p410
    $region38: #{deconv3d_block_forward.3} parent=5 // pred_check_branch
      %413 = sbr.rel (%p411) target = $region40
    $region39: #{deconv3d_block_forward.3} parent=5 // pred_region
      %s414 = ssub.s32 %s9, 2
      // Predicated region
      $region41: #{deconv3d_block_forward.3} parent=39 // pred_check
        %p415 = pneg %p122
      $region42: #{deconv3d_block_forward.3} parent=39 // pred_check_branch
        %417 = sbr.rel (%p415) target = $region44
      $region43: #{deconv3d_block_forward.3} parent=39 // pred_region
        %p418 = scmp.lt.s32.totalorder %s21, 1
        %s419 = scalar_select %p418, %s21, 1
        %p420 = scmp.lt.s32.totalorder %s20, 0
        %s421 = scalar_select %p420, %s20, 0
        %s422 = smul.addr %s419, 8
        %s423 = sadd.s32 %s421, %s422
        %s424 = smul.addr %s423, 8
        %s425 = scalar_lea.vmem %s3, %s424
      $region44: #{deconv3d_block_forward.3} parent=39 // pred_fallthru
        _
    $region40: #{deconv3d_block_forward.3} parent=5 // pred_fallthru
      _
  $region6: #{deconv3d_block_forward.3} parent=0 // loop_footer
    %s13 = sadd.s32 1, %s9
  $region7: #{deconv3d_block_forward.3} parent=0 // loop_footer_branch
    %8 = sbr.rel target = $region3
  $region8: #{deconv3d_block_forward.3} parent=0 // loop_exit
    _

// kernel: mul.14
$region0: #{mul.14}
  %s0 = inlined_call_operand.vmem [shape: f32[8], index: 0, kind: input, shape index: {}]
  %s1 = inlined_call_operand.vmem [shape: f32[2,4], index: 1, kind: output, shape index: {}]
  $region1: #{mul.14} parent=0
    #allocation0 [shape = 'u8[4096]{0}', space=vmem, size = 0x1000, scoped, tag = 'scoped mem for output reshape']
    #allocation1 [shape = 'u8[4096]{0}', space=vmem, size = 0x1000, scoped, tag = 'scoped mem for input reshape']
    %s3 = sshllo.u32 0, 1
    %v4 = vld [vmem:[%s0] sm:%s3]
    %5 = vst [vmem:[#allocation1] sm:%s3] %v4
    %v6 = vld [vmem:[#allocation1] sm:$0x1]
    %vm7 = vcmask 31744
    %8 = vst.msk [vmem:[#allocation0] sm:$0x1] %vm7, %v6
    %v9 = vld [vmem:[#allocation1] sm:$0x1]
    %10 = vrot.lane.b32.xlu0 %v9, 124
    %v11 = vpop.permute.xlu0 %10
    %vm12 = vcmask 31744
    %s13 = scalar_lea.vmem [#allocation0], 1
    %14 = vst.msk [vmem:[%s13] sm:$0x1] %vm12, %v11
    %s16 = sshllo.u32 0, 2
    %v18 = vld [vmem:[#allocation0] sm:%s16]
    %s19 = sshllo.u32 0, 2
    %20 = vst [vmem:[%s1] sm:%s19] %v18

// kernel: deconv3d_block_forward.4
$region0: #{deconv3d_block_forward.4}
  #allocation0 [shape = 'u32[]', space=smem, size = 0x4, offset = 0x4, fixed_abs, tag = 'smem constant byte address 0x4 - core index']
  #allocation1 [shape = 'u32[144,128]{1,0:T(1,128)}', space=vmem, size = 0x12000, scoped, tag = 'internal scratch']
  %s0 = inlined_call_operand.vmem [shape: f32[3,8,72], index: 0, kind: input, shape index: {}]
  %s1 = inlined_call_operand.vmem [shape: f32[8,1], index: 1, kind: input, shape index: {}]
  %s2 = inlined_call_operand.vmem [shape: f32[1,80], index: 2, kind: input, shape index: {}]
  %s3 = inlined_call_operand.vmem [shape: f32[2,10,8,110], index: 3, kind: input, shape index: {}]
  %s4 = inlined_call_operand.vmem [shape: f32[2,8,8,80], index: 4, kind: output, shape index: {0}]
  %s5 = inlined_call_operand.vmem [shape: f32[2,8,8,1], index: 5, kind: output, shape index: {1}]
  %s6 = inlined_call_operand.vmem [shape: f32[2,8,8,1], index: 6, kind: output, shape index: {2}]
  %7 = xla_tuple %s4, %s5, %s6
  %s8 = sld [smem:[#allocation0]]
  $region77: #{deconv3d_block_forward.4} parent=0
    _
  %s10 = ssub.s32 1, %s8
  %s11 = scalar_select 0, %s10, %s8
  loop: start=0, step=1, limit=50
  $region2: #{deconv3d_block_forward.4} parent=0 // loop_pre_header
    _
  $region3: #{deconv3d_block_forward.4} parent=0 // loop_header
    %s13 = sphi 0, %s17
    %p14 = scmp.ge.s32.totalorder %s13, 50
    %s20 = sphi 0, %s39
    %s21 = sphi 0, %s35
    %s22 = sphi 0, %s31
    %s23 = sphi 0, %s20
    %s24 = sphi 0, %s21
    %s25 = sphi 0, %s22
    %s26 = sphi 0, %s23
    %s27 = sphi 0, %s24
    %s28 = sphi 0, %s25
    %s40 = sphi 0, %s40
    %s42 = sphi 0, %s40
    %s43 = sphi 0, %s42
    %s57 = sphi 0, %s43
    %s61 = sphi 0, %s61
    %s63 = sphi 0, %s61
    %s64 = sphi 0, %s63
    %s78 = sphi 0, %s64
    %s82 = sphi 0, %s82
    %s84 = sphi 0, %s82
    %s85 = sphi 0, %s84
    %s99 = sphi 0, %s85
    %s109 = sphi 0, %s111
    %s112 = sphi 0, %s109
    %s113 = sphi 0, %s112
    %s129 = sphi 0, %s113
    %s137 = sphi 0, %s139
    %s140 = sphi 0, %s137
    %s141 = sphi 0, %s140
    %s157 = sphi 0, %s141
    %s165 = sphi 0, %s167
    %s168 = sphi 0, %s165
    %s169 = sphi 0, %s168
    %s185 = sphi 0, %s169
    %s193 = sphi 0, %s195
    %s196 = sphi 0, %s193
    %s197 = sphi 0, %s196
    %s213 = sphi 0, %s197
  $region4: #{deconv3d_block_forward.4} parent=0 // loop_header_branch
    %16 = sbr.rel (%p14) target = $region8
  $region5: #{deconv3d_block_forward.4} parent=0 // loop_body
    %s18 = ssub.s32 %s13, 1
    %s19 = ssub.s32 %s13, 2
    %s29 = sadd.s32 1, %s22
    %p30 = scmp.ge.s32.totalorder %s29, 3
    %s31 = scalar_select %p30, 0, %s29
    %s32 = sadd.s32 1, %s21
    %s33 = scalar_select %p30, %s32, %s21
    %p34 = scmp.ge.s32.totalorder %s33, 2
    %s35 = scalar_select %p34, 0, %s33
    %s36 = sadd.s32 1, %s20
    %s37 = scalar_select %p34, %s36, %s20
    %p38 = scmp.ge.s32.totalorder %s37, 8
    %s39 = scalar_select %p38, 0, %s37
    %s41 = sadd.s32 %s40, 1
    %p44 = scmp.eq.s32.totalorder %s13, 47
    %p45 = scmp.ne.s32.totalorder %s40, %s42
    %p46 = scmp.eq.s32.totalorder %s13, 0
    %p47 = por %p45, %p46
    %p48 = scmp.ne.s32.totalorder %s40, %s42
    %p49 = scmp.eq.s32.totalorder %s18, 47
    %p50 = por %p48, %p49
    %p51 = scmp.ne.s32.totalorder %s42, %s43
    %p52 = scmp.eq.s32.totalorder %s18, 0
    %p53 = por %p51, %p52
    %p54 = scmp.ne.s32.totalorder %s42, %s43
    %p55 = scmp.eq.s32.totalorder %s19, 47
    %p56 = por %p54, %p55
    %p58 = scmp.ne.s32.totalorder %s43, %s57
    %p59 = scmp.eq.s32.totalorder %s19, 0
    %p60 = por %p58, %p59
    %s62 = sadd.s32 %s61, 1
    %p65 = scmp.eq.s32.totalorder %s13, 47
    %p66 = scmp.ne.s32.totalorder %s61, %s63
    %p67 = scmp.eq.s32.totalorder %s13, 0
    %p68 = por %p66, %p67
    %p69 = scmp.ne.s32.totalorder %s61, %s63
    %p70 = scmp.eq.s32.totalorder %s18, 47
    %p71 = por %p69, %p70
    %p72 = scmp.ne.s32.totalorder %s63, %s64
    %p73 = scmp.eq.s32.totalorder %s18, 0
    %p74 = por %p72, %p73
    %p75 = scmp.ne.s32.totalorder %s63, %s64
    %p76 = scmp.eq.s32.totalorder %s19, 47
    %p77 = por %p75, %p76
    %p79 = scmp.ne.s32.totalorder %s64, %s78
    %p80 = scmp.eq.s32.totalorder %s19, 0
    %p81 = por %p79, %p80
    %s83 = sadd.s32 %s82, 1
    %p86 = scmp.eq.s32.totalorder %s13, 47
    %p87 = scmp.ne.s32.totalorder %s82, %s84
    %p88 = scmp.eq.s32.totalorder %s13, 0
    %p89 = por %p87, %p88
    %p90 = scmp.ne.s32.totalorder %s82, %s84
    %p91 = scmp.eq.s32.totalorder %s18, 47
    %p92 = por %p90, %p91
    %p93 = scmp.ne.s32.totalorder %s84, %s85
    %p94 = scmp.eq.s32.totalorder %s18, 0
    %p95 = por %p93, %p94
    %p96 = scmp.ne.s32.totalorder %s84, %s85
    %p97 = scmp.eq.s32.totalorder %s19, 47
    %p98 = por %p96, %p97
    %p100 = scmp.ne.s32.totalorder %s85, %s99
    %p101 = scmp.eq.s32.totalorder %s19, 0
    %p102 = por %p100, %p101
    %s103 = sadd.s32 %s20, %s22
    %s104 = sadd.s32 %s39, %s31
    %s105 = ssub.s32 %s21, %s35
    %s106 = ssub.s32 %s103, %s104
    %s107 = sor.u32 %s105, %s106
    %p108 = scmp.eq.s32.totalorder %s107, 0
    %s110 = sadd.s32 %s109, 1
    %s111 = scalar_select %p108, %s109, %s110
    %p114 = pneg %p108
    %p115 = scmp.eq.s32.totalorder %s13, 47
    %p116 = por %p114, %p115
    %p117 = scmp.ne.s32.totalorder %s109, %s112
    %p118 = scmp.eq.s32.totalorder %s13, 0
    %p119 = por %p117, %p118
    %p120 = scmp.ne.s32.totalorder %s109, %s112
    %p121 = scmp.eq.s32.totalorder %s18, 47
    %p122 = por %p120, %p121
    %p123 = scmp.ne.s32.totalorder %s112, %s113
    %p124 = scmp.eq.s32.totalorder %s18, 0
    %p125 = por %p123, %p124
    %p126 = scmp.ne.s32.totalorder %s112, %s113
    %p127 = scmp.eq.s32.totalorder %s19, 47
    %p128 = por %p126, %p127
    %p130 = scmp.ne.s32.totalorder %s113, %s129
    %p131 = scmp.eq.s32.totalorder %s19, 0
    %p132 = por %p130, %p131
    %s133 = ssub.s32 %s21, %s35
    %s134 = ssub.s32 %s20, %s39
    %s135 = sor.u32 %s133, %s134
    %p136 = scmp.eq.s32.totalorder %s135, 0
    %s138 = sadd.s32 %s137, 1
    %s139 = scalar_select %p136, %s137, %s138
    %p142 = pneg %p136
    %p143 = scmp.eq.s32.totalorder %s13, 47
    %p144 = por %p142, %p143
    %p145 = scmp.ne.s32.totalorder %s137, %s140
    %p146 = scmp.eq.s32.totalorder %s13, 0
    %p147 = por %p145, %p146
    %p148 = scmp.ne.s32.totalorder %s137, %s140
    %p149 = scmp.eq.s32.totalorder %s18, 47
    %p150 = por %p148, %p149
    %p151 = scmp.ne.s32.totalorder %s140, %s141
    %p152 = scmp.eq.s32.totalorder %s18, 0
    %p153 = por %p151, %p152
    %p154 = scmp.ne.s32.totalorder %s140, %s141
    %p155 = scmp.eq.s32.totalorder %s19, 47
    %p156 = por %p154, %p155
    %p158 = scmp.ne.s32.totalorder %s141, %s157
    %p159 = scmp.eq.s32.totalorder %s19, 0
    %p160 = por %p158, %p159
    %s161 = ssub.s32 %s21, %s35
    %s162 = ssub.s32 %s20, %s39
    %s163 = sor.u32 %s161, %s162
    %p164 = scmp.eq.s32.totalorder %s163, 0
    %s166 = sadd.s32 %s165, 1
    %s167 = scalar_select %p164, %s165, %s166
    %p170 = pneg %p164
    %p171 = scmp.eq.s32.totalorder %s13, 47
    %p172 = por %p170, %p171
    %p173 = scmp.ne.s32.totalorder %s165, %s168
    %p174 = scmp.eq.s32.totalorder %s13, 0
    %p175 = por %p173, %p174
    %p176 = scmp.ne.s32.totalorder %s165, %s168
    %p177 = scmp.eq.s32.totalorder %s18, 47
    %p178 = por %p176, %p177
    %p179 = scmp.ne.s32.totalorder %s168, %s169
    %p180 = scmp.eq.s32.totalorder %s18, 0
    %p181 = por %p179, %p180
    %p182 = scmp.ne.s32.totalorder %s168, %s169
    %p183 = scmp.eq.s32.totalorder %s19, 47
    %p184 = por %p182, %p183
    %p186 = scmp.ne.s32.totalorder %s169, %s185
    %p187 = scmp.eq.s32.totalorder %s19, 0
    %p188 = por %p186, %p187
    %s189 = ssub.s32 %s21, %s35
    %s190 = ssub.s32 %s20, %s39
    %s191 = sor.u32 %s189, %s190
    %p192 = scmp.eq.s32.totalorder %s191, 0
    %s194 = sadd.s32 %s193, 1
    %s195 = scalar_select %p192, %s193, %s194
    %p198 = pneg %p192
    %p199 = scmp.eq.s32.totalorder %s13, 47
    %p200 = por %p198, %p199
    %p201 = scmp.ne.s32.totalorder %s193, %s196
    %p202 = scmp.eq.s32.totalorder %s13, 0
    %p203 = por %p201, %p202
    %p204 = scmp.ne.s32.totalorder %s193, %s196
    %p205 = scmp.eq.s32.totalorder %s18, 47
    %p206 = por %p204, %p205
    %p207 = scmp.ne.s32.totalorder %s196, %s197
    %p208 = scmp.eq.s32.totalorder %s18, 0
    %p209 = por %p207, %p208
    %p210 = scmp.ne.s32.totalorder %s196, %s197
    %p211 = scmp.eq.s32.totalorder %s19, 47
    %p212 = por %p210, %p211
    %p214 = scmp.ne.s32.totalorder %s197, %s213
    %p215 = scmp.eq.s32.totalorder %s19, 0
    %p216 = por %p214, %p215
    %p217 = scmp.le.s32.totalorder 1, %s13
    %p218 = scmp.lt.s32.totalorder %s13, 49
    %p219 = pnand %p217, %p218
    %p220 = pneg %p219
    // Predicated region
    $region9: #{deconv3d_block_forward.4} parent=5 // pred_check
      _
    $region10: #{deconv3d_block_forward.4} parent=5 // pred_check_branch
      %222 = sbr.rel (%p219) target = $region12
    $region11: #{deconv3d_block_forward.4} parent=5 // pred_region
      %s223 = ssub.s32 %s13, 1
      // Predicated region
      $region13: #{deconv3d_block_forward.4} parent=11 // pred_check
        %p224 = pneg %p53
      $region14: #{deconv3d_block_forward.4} parent=11 // pred_check_branch
        %226 = sbr.rel (%p224) target = $region16
      $region15: #{deconv3d_block_forward.4} parent=11 // pred_region
        _
      $region16: #{deconv3d_block_forward.4} parent=11 // pred_fallthru
        _
      // Predicated region
      $region17: #{deconv3d_block_forward.4} parent=11 // pred_check
        %p227 = pneg %p74
      $region18: #{deconv3d_block_forward.4} parent=11 // pred_check_branch
        %229 = sbr.rel (%p227) target = $region20
      $region19: #{deconv3d_block_forward.4} parent=11 // pred_region
        _
      $region20: #{deconv3d_block_forward.4} parent=11 // pred_fallthru
        _
      // Predicated region
      $region21: #{deconv3d_block_forward.4} parent=11 // pred_check
        %p230 = pneg %p95
      $region22: #{deconv3d_block_forward.4} parent=11 // pred_check_branch
        %232 = sbr.rel (%p230) target = $region24
      $region23: #{deconv3d_block_forward.4} parent=11 // pred_region
        _
      $region24: #{deconv3d_block_forward.4} parent=11 // pred_fallthru
        _
    $region12: #{deconv3d_block_forward.4} parent=5 // pred_fallthru
      _
    %p233 = scmp.lt.s32.totalorder %s13, 48
    // Predicated region
    $region25: #{deconv3d_block_forward.4} parent=5 // pred_check
      %p234 = pneg %p233
    $region26: #{deconv3d_block_forward.4} parent=5 // pred_check_branch
      %236 = sbr.rel (%p234) target = $region28
    $region27: #{deconv3d_block_forward.4} parent=5 // pred_region
      // Predicated region
      $region29: #{deconv3d_block_forward.4} parent=27 // pred_check
        %p237 = pneg %p119
      $region30: #{deconv3d_block_forward.4} parent=27 // pred_check_branch
        %239 = sbr.rel (%p237) target = $region32
      $region31: #{deconv3d_block_forward.4} parent=27 // pred_region
        %s240 = sadd.s32 %s20, %s22
        %p241 = scmp.lt.s32.totalorder %s21, 1
        %s242 = scalar_select %p241, %s21, 1
        %p243 = scmp.lt.s32.totalorder %s240, 9
        %s244 = scalar_select %p243, %s240, 9
        %s245 = smul.addr %s242, 10
        %s246 = sadd.s32 %s244, %s245
        %s247 = smul.addr %s246, 8
        %s248 = scalar_lea.vmem %s3, %s247
        %s249 = sadd.s32 %s20, %s22
      $region32: #{deconv3d_block_forward.4} parent=27 // pred_fallthru
        _
    $region28: #{deconv3d_block_forward.4} parent=5 // pred_fallthru
      _
    %p250 = scmp.le.s32.totalorder 1, %s13
    %p251 = scmp.lt.s32.totalorder %s13, 49
    %p252 = pnand %p250, %p251
    %p253 = pneg %p252
    // Predicated region
    $region33: #{deconv3d_block_forward.4} parent=5 // pred_check
      _
    $region34: #{deconv3d_block_forward.4} parent=5 // pred_check_branch
      %255 = sbr.rel (%p252) target = $region36
    $region35: #{deconv3d_block_forward.4} parent=5 // pred_region
      %s256 = ssub.s32 %s13, 1
      %p257 = pneg %p53
      %p258 = pneg %p50
      %p259 = pneg %p74
      %p260 = pneg %p71
      %p261 = pneg %p95
      %p262 = pneg %p92
      %s263 = sadd.s32 %s23, %s25
      %p264 = scmp.lt.s32.totalorder %s24, 1
      %s265 = scalar_select %p264, %s24, 1
      %p266 = scmp.lt.s32.totalorder %s263, 9
      %s267 = scalar_select %p266, %s263, 9
      %s268 = smul.addr %s265, 10
      %s269 = sadd.s32 %s267, %s268
      %s270 = smul.addr %s269, 8
      %s271 = scalar_lea.vmem %s3, %s270
      %p272 = pneg %p125
      %p273 = pneg %p122
      %p274 = pneg %p153
      %p275 = pneg %p150
      %p276 = scmp.lt.s32.totalorder %s24, 1
      %s277 = scalar_select %p276, %s24, 1
      %p278 = scmp.lt.s32.totalorder %s23, 7
      %s279 = scalar_select %p278, %s23, 7
      %s280 = smul.addr %s277, 8
      %s281 = sadd.s32 %s279, %s280
      %s282 = smul.addr %s281, 8
      %s283 = scalar_lea.vmem %s4, %s282
      %p284 = pneg %p181
      %p285 = pneg %p178
      %p286 = scmp.lt.s32.totalorder %s24, 1
      %s287 = scalar_select %p286, %s24, 1
      %p288 = scmp.lt.s32.totalorder %s23, 7
      %s289 = scalar_select %p288, %s23, 7
      %s290 = smul.addr %s287, 8
      %s291 = sadd.s32 %s289, %s290
      %s292 = smul.addr %s291, 8
      %s293 = scalar_lea.vmem %s5, %s292
      %p294 = pneg %p209
      %p295 = pneg %p206
      %p296 = scmp.lt.s32.totalorder %s24, 1
      %s297 = scalar_select %p296, %s24, 1
      %p298 = scmp.lt.s32.totalorder %s23, 7
      %s299 = scalar_select %p298, %s23, 7
      %s300 = smul.addr %s297, 8
      %s301 = sadd.s32 %s299, %s300
      %s302 = smul.addr %s301, 8
      %s303 = scalar_lea.vmem %s6, %s302
      %s304 = sadd.s32 %s23, %s25
      %p305 = scmp.lt.s32.totalorder %s24, 1
      %s306 = scalar_select %p305, %s24, 1
      %p307 = scmp.lt.s32.totalorder %s304, 9
      %s308 = scalar_select %p307, %s304, 9
      %s309 = smul.addr %s306, 10
      %s310 = sadd.s32 %s308, %s309
      %s311 = smul.addr %s310, 8
      %s312 = scalar_lea.vmem %s3, %s311
      %s313 = sadd.s32 %s23, %s25
      %p314 = scmp.lt.s32.totalorder %s24, 1
      %s315 = scalar_select %p314, %s24, 1
      %p316 = scmp.lt.s32.totalorder %s23, 7
      %s317 = scalar_select %p316, %s23, 7
      %s318 = smul.addr %s315, 8
      %s319 = sadd.s32 %s317, %s318
      %s320 = smul.addr %s319, 8
      %s321 = scalar_lea.vmem %s4, %s320
      %p322 = scmp.lt.s32.totalorder %s24, 1
      %s323 = scalar_select %p322, %s24, 1
      %p324 = scmp.lt.s32.totalorder %s23, 7
      %s325 = scalar_select %p324, %s23, 7
      %s326 = smul.addr %s323, 8
      %s327 = sadd.s32 %s325, %s326
      %s328 = smul.addr %s327, 8
      %s329 = scalar_lea.vmem %s5, %s328
      %p330 = scmp.lt.s32.totalorder %s24, 1
      %s331 = scalar_select %p330, %s24, 1
      %p332 = scmp.lt.s32.totalorder %s23, 7
      %s333 = scalar_select %p332, %s23, 7
      %s334 = smul.addr %s331, 8
      %s335 = sadd.s32 %s333, %s334
      %s336 = smul.addr %s335, 8
      %s337 = scalar_lea.vmem %s6, %s336
      %v338 = vld [vmem:[%s312] sm:$0xff]
      %340 = vrot.lane.b32.xlu0 %v338, 127
      %v341 = vpop.permute.xlu0 %340
      %343 = vrot.lane.b32.xlu0 %v338, 126
      %v344 = vpop.permute.xlu0 %343
      %346 = vrot.lane.b32.xlu0 %v338, 118
      %v347 = vpop.permute.xlu0 %346
      %349 = vrot.lane.b32.xlu0 %v338, 117
      %v350 = vpop.permute.xlu0 %349
      %352 = vrot.lane.b32.xlu0 %v338, 116
      %v353 = vpop.permute.xlu0 %352
      %355 = vrot.lane.b32.xlu0 %v338, 108
      %v356 = vpop.permute.xlu0 %355
      %358 = vrot.lane.b32.xlu0 %v338, 107
      %v359 = vpop.permute.xlu0 %358
      %361 = vrot.lane.b32.xlu0 %v338, 106
      %v362 = vpop.permute.xlu0 %361
      %s364 = smul.u32 %s25, 8
      %s365 = scalar_lea.vmem %s0, %s364
      %v366 = vld [vmem:[%s365] sm:$0xff]
      %vm367 = vcmask 588800
      %v369 = vsel %vm367, %v366, 0
      %371 = vmatprep.subr.mxu0 0.0
      %372 = vmatpush1.msra.mxu0 %v338
      %373 = vmatprep.subr.mxu0 0.0
      %374 = vmatpush1.msra.mxu0 %v341
      %375 = vmatprep.subr.mxu0 0.0
      %376 = vmatpush1.msra.mxu0 %v344
      %377 = vmatprep.subr.mxu0 0.0
      %378 = vmatpush1.msra.mxu0 %v347
      %379 = vmatprep.subr.mxu0 0.0
      %380 = vmatpush1.msra.mxu0 %v350
      %381 = vmatprep.subr.mxu0 0.0
      %382 = vmatpush1.msra.mxu0 %v353
      %383 = vmatprep.subr.mxu0 0.0
      %384 = vmatpush1.msra.mxu0 %v356
      %385 = vmatprep.subr.mxu0 0.0
      %386 = vmatpush1.msra.mxu0 %v359
      %387 = vmatprep.subr.mxu0 0.0
      %388 = vmatpush1.msra.mxu0 %v362
      %389 = vmatprep.subr.mxu0 0.0
      %390 = vmatpush1.msra.mxu0 0.0
      %391 = vmatprep.subr.mxu0 0.0
      %392 = vmatpush1.msra.mxu0 0.0
      %393 = vmatprep.subr.mxu0 0.0
      %394 = vmatpush1.msra.mxu0 0.0
      %395 = vmatprep.subr.mxu0 0.0
      %396 = vmatpush1.msra.mxu0 0.0
      %397 = vmatprep.subr.mxu0 0.0
      %398 = vmatpush1.msra.mxu0 0.0
      %399 = vmatprep.subr.mxu0 0.0
      %400 = vmatpush1.msra.mxu0 0.0
      %401 = vmatprep.subr.mxu0 0.0
      %402 = vmatpush1.msra.mxu0 0.0
      %403 = vmatprep.subr.mxu0 0.0
      %404 = vmatpush1.msra.mxu0 0.0
      %405 = vmatprep.subr.mxu0 0.0
      %406 = vmatpush1.msra.mxu0 0.0
      %407 = vmatprep.subr.mxu0 0.0
      %408 = vmatpush1.msra.mxu0 0.0
      %409 = vmatprep.subr.mxu0 0.0
      %410 = vmatpush1.msra.mxu0 0.0
      %411 = vmatprep.subr.mxu0 0.0
      %412 = vmatpush1.msra.mxu0 0.0
      %413 = vmatprep.subr.mxu0 0.0
      %414 = vmatpush1.msra.mxu0 0.0
      %415 = vmatprep.subr.mxu0 0.0
      %416 = vmatpush1.msra.mxu0 0.0
      %417 = vmatprep.subr.mxu0 0.0
      %418 = vmatpush1.msra.mxu0 0.0
      %419 = vmatprep.subr.mxu0 0.0
      %420 = vmatpush1.msra.mxu0 0.0
      %421 = vmatprep.subr.mxu0 0.0
      %422 = vmatpush1.msra.mxu0 0.0
      %423 = vmatprep.subr.mxu0 0.0
      %424 = vmatpush1.msra.mxu0 0.0
      %425 = vmatprep.subr.mxu0 0.0
      %426 = vmatpush1.msra.mxu0 0.0
      %427 = vmatprep.subr.mxu0 0.0
      %428 = vmatpush1.msra.mxu0 0.0
      %429 = vmatprep.subr.mxu0 0.0
      %430 = vmatpush1.msra.mxu0 0.0
      %431 = vmatprep.subr.mxu0 0.0
      %432 = vmatpush1.msra.mxu0 0.0
      %433 = vmatprep.subr.mxu0 0.0
      %434 = vmatpush1.msra.mxu0 0.0
      %435 = vmatprep.mubr.f32.mxu0 0.0
      %436 = vmatmul.mubr.f32.gmra.mrb[0].mxu0 %v369
      %v437 = vpop.f32.mrb[0].mxu0
      %v438 = vadd.f32 0.0, %v437
      %v439 = vpop.f32.mrb[0].mxu0
      %440 = vdwg.mxu0
      %p441 = scmp.eq.s32.totalorder %s25, 0
      // Predicated region
      $region37: #{deconv3d_block_forward.4} parent=35 // pred_check
        %p442 = pneg %p441
      $region38: #{deconv3d_block_forward.4} parent=35 // pred_check_branch
        %444 = sbr.rel (%p442) target = $region40
      $region39: #{deconv3d_block_forward.4} parent=35 // pred_region
        %v445 = vld [vmem:[%s1] sm:$0xff]
        %447 = vset.pattern.permute.xlu0 0
        %448 = vperm.xlu0 %447, %v445
        %v449 = vpop.permute.xlu0 %448
        %v451 = vadd.f32 %v438, %v449
        %vm452 = vcmask 654336
        %453 = vst.msk [vmem:[%s321] sm:$0xff] %vm452, %v451
      $region40: #{deconv3d_block_forward.4} parent=35 // pred_fallthru
        _
      %p454 = scmp.gt.s32.totalorder %s25, 0
      // Predicated region
      $region41: #{deconv3d_block_forward.4} parent=35 // pred_check
        %p455 = pneg %p454
      $region42: #{deconv3d_block_forward.4} parent=35 // pred_check_branch
        %457 = sbr.rel (%p455) target = $region44
      $region43: #{deconv3d_block_forward.4} parent=35 // pred_region
        %v458 = vld [vmem:[%s321] sm:$0xff]
        %v459 = vadd.f32 %v458, %v438
        %vm460 = vcmask 654336
        %461 = vst.msk [vmem:[%s321] sm:$0xff] %vm460, %v459
      $region44: #{deconv3d_block_forward.4} parent=35 // pred_fallthru
        _
      %p462 = scmp.eq.s32.totalorder %s25, 2
      // Predicated region
      $region45: #{deconv3d_block_forward.4} parent=35 // pred_check
        %p463 = pneg %p462
      $region46: #{deconv3d_block_forward.4} parent=35 // pred_check_branch
        %465 = sbr.rel (%p463) target = $region48
      $region47: #{deconv3d_block_forward.4} parent=35 // pred_region
        %v466 = vld [vmem:[%s321] sm:$0xff]
        %v467 = vld [vmem:[%s2] sm:$0x1]
        %vm468 = vcmp.gt.f32.partialorder %v467, 0.0
        %v469 = vsel %vm468, 1, 0
        %v470 = vlaneseq
        %v471 = vshrl.u32 %v470, 7
        %v472 = vsub.s32 0, %v471
        %v473 = vrot.slane %v469, %v472
        %vm474 = vcmp.eq.s32.totalorder %v473, 1
        %v475 = vsel %vm474, %v466, 0.0
        %vm476 = vcmask 654336
        %v477 = vsel %vm476, %v475, 0.0
        %478 = vadd.xlane.f32.xlu0 %v477
        %v479 = vpop.xlane.xlu0 %478
        %vm480 = vcmask 7168
        %481 = vst.msk [vmem:[%s329] sm:$0xff] %vm480, %v479
        %v482 = vmul.f32 %v475, %v475
        %v483 = vsel %vm476, %v482, 0.0
        %484 = vadd.xlane.f32.xlu0 %v483
        %v485 = vpop.xlane.xlu0 %484
        %486 = vst.msk [vmem:[%s337] sm:$0xff] %vm480, %v485
      $region48: #{deconv3d_block_forward.4} parent=35 // pred_fallthru
        _
      %p487 = scmp.lt.s32.totalorder %s24, 1
      %s488 = scalar_select %p487, %s24, 1
      %p489 = scmp.lt.s32.totalorder %s23, 7
      %s490 = scalar_select %p489, %s23, 7
      %s491 = smul.addr %s488, 8
      %s492 = sadd.s32 %s490, %s491
      %s493 = smul.addr %s492, 8
      %s494 = scalar_lea.vmem %s4, %s493
      %p495 = scmp.lt.s32.totalorder %s24, 1
      %s496 = scalar_select %p495, %s24, 1
      %p497 = scmp.lt.s32.totalorder %s23, 7
      %s498 = scalar_select %p497, %s23, 7
      %s499 = smul.addr %s496, 8
      %s500 = sadd.s32 %s498, %s499
      %s501 = smul.addr %s500, 8
      %s502 = scalar_lea.vmem %s5, %s501
      %p503 = scmp.lt.s32.totalorder %s24, 1
      %s504 = scalar_select %p503, %s24, 1
      %p505 = scmp.lt.s32.totalorder %s23, 7
      %s506 = scalar_select %p505, %s23, 7
      %s507 = smul.addr %s504, 8
      %s508 = sadd.s32 %s506, %s507
      %s509 = smul.addr %s508, 8
      %s510 = scalar_lea.vmem %s6, %s509
      // Predicated region
      $region49: #{deconv3d_block_forward.4} parent=35 // pred_check
        %p511 = pneg %p150
      $region50: #{deconv3d_block_forward.4} parent=35 // pred_check_branch
        %513 = sbr.rel (%p511) target = $region52
      $region51: #{deconv3d_block_forward.4} parent=35 // pred_region
        _
      $region52: #{deconv3d_block_forward.4} parent=35 // pred_fallthru
        _
      // Predicated region
      $region53: #{deconv3d_block_forward.4} parent=35 // pred_check
        %p514 = pneg %p178
      $region54: #{deconv3d_block_forward.4} parent=35 // pred_check_branch
        %516 = sbr.rel (%p514) target = $region56
      $region55: #{deconv3d_block_forward.4} parent=35 // pred_region
        _
      $region56: #{deconv3d_block_forward.4} parent=35 // pred_fallthru
        _
      // Predicated region
      $region57: #{deconv3d_block_forward.4} parent=35 // pred_check
        %p517 = pneg %p206
      $region58: #{deconv3d_block_forward.4} parent=35 // pred_check_branch
        %519 = sbr.rel (%p517) target = $region60
      $region59: #{deconv3d_block_forward.4} parent=35 // pred_region
        _
      $region60: #{deconv3d_block_forward.4} parent=35 // pred_fallthru
        _
    $region36: #{deconv3d_block_forward.4} parent=5 // pred_fallthru
      _
    %p520 = scmp.le.s32.totalorder 2, %s13
    // Predicated region
    $region61: #{deconv3d_block_forward.4} parent=5 // pred_check
      %p521 = pneg %p520
    $region62: #{deconv3d_block_forward.4} parent=5 // pred_check_branch
      %523 = sbr.rel (%p521) target = $region64
    $region63: #{deconv3d_block_forward.4} parent=5 // pred_region
      %s524 = ssub.s32 %s13, 2
      // Predicated region
      $region65: #{deconv3d_block_forward.4} parent=63 // pred_check
        %p525 = pneg %p156
      $region66: #{deconv3d_block_forward.4} parent=63 // pred_check_branch
        %527 = sbr.rel (%p525) target = $region68
      $region67: #{deconv3d_block_forward.4} parent=63 // pred_region
        %p528 = scmp.lt.s32.totalorder %s27, 1
        %s529 = scalar_select %p528, %s27, 1
        %p530 = scmp.lt.s32.totalorder %s26, 7
        %s531 = scalar_select %p530, %s26, 7
        %s532 = smul.addr %s529, 8
        %s533 = sadd.s32 %s531, %s532
        %s534 = smul.addr %s533, 8
        %s535 = scalar_lea.vmem %s4, %s534
      $region68: #{deconv3d_block_forward.4} parent=63 // pred_fallthru
        _
      // Predicated region
      $region69: #{deconv3d_block_forward.4} parent=63 // pred_check
        %p536 = pneg %p184
      $region70: #{deconv3d_block_forward.4} parent=63 // pred_check_branch
        %538 = sbr.rel (%p536) target = $region72
      $region71: #{deconv3d_block_forward.4} parent=63 // pred_region
        %p539 = scmp.lt.s32.totalorder %s27, 1
        %s540 = scalar_select %p539, %s27, 1
        %p541 = scmp.lt.s32.totalorder %s26, 7
        %s542 = scalar_select %p541, %s26, 7
        %s543 = smul.addr %s540, 8
        %s544 = sadd.s32 %s542, %s543
        %s545 = smul.addr %s544, 8
        %s546 = scalar_lea.vmem %s5, %s545
      $region72: #{deconv3d_block_forward.4} parent=63 // pred_fallthru
        _
      // Predicated region
      $region73: #{deconv3d_block_forward.4} parent=63 // pred_check
        %p547 = pneg %p212
      $region74: #{deconv3d_block_forward.4} parent=63 // pred_check_branch
        %549 = sbr.rel (%p547) target = $region76
      $region75: #{deconv3d_block_forward.4} parent=63 // pred_region
        %p550 = scmp.lt.s32.totalorder %s27, 1
        %s551 = scalar_select %p550, %s27, 1
        %p552 = scmp.lt.s32.totalorder %s26, 7
        %s553 = scalar_select %p552, %s26, 7
        %s554 = smul.addr %s551, 8
        %s555 = sadd.s32 %s553, %s554
        %s556 = smul.addr %s555, 8
        %s557 = scalar_lea.vmem %s6, %s556
      $region76: #{deconv3d_block_forward.4} parent=63 // pred_fallthru
        _
    $region64: #{deconv3d_block_forward.4} parent=5 // pred_fallthru
      _
  $region6: #{deconv3d_block_forward.4} parent=0 // loop_footer
    %s17 = sadd.s32 1, %s13
  $region7: #{deconv3d_block_forward.4} parent=0 // loop_footer_branch
    %12 = sbr.rel target = $region3
  $region8: #{deconv3d_block_forward.4} parent=0 // loop_exit
    _

// kernel: deconv3d_block_forward.5
$region0: #{deconv3d_block_forward.5}
  #allocation0 [shape = 'u32[]', space=smem, size = 0x4, offset = 0x4, fixed_abs, tag = 'smem constant byte address 0x4 - core index']
  #allocation1 [shape = 'u32[144,128]{1,0:T(1,128)}', space=vmem, size = 0x12000, scoped, tag = 'internal scratch']
  %s0 = inlined_call_operand.vmem [shape: f32[2,8,2,4,80], index: 0, kind: input, shape index: {}]
  %s1 = inlined_call_operand.vmem [shape: f32[2,2,4,1], index: 1, kind: input, shape index: {}]
  %s2 = inlined_call_operand.vmem [shape: f32[2,2,4,1], index: 2, kind: input, shape index: {}]
  %s3 = inlined_call_operand.vmem [shape: f32[2,8,2,4,80], index: 3, kind: output, shape index: {}]
  %s4 = sld [smem:[#allocation0]]
  $region45: #{deconv3d_block_forward.5} parent=0
    _
  %s6 = ssub.s32 1, %s4
  %s7 = scalar_select 0, %s6, %s4
  loop: start=0, step=1, limit=34
  $region2: #{deconv3d_block_forward.5} parent=0 // loop_pre_header
    _
  $region3: #{deconv3d_block_forward.5} parent=0 // loop_header
    %s9 = sphi 0, %s13
    %p10 = scmp.ge.s32.totalorder %s9, 34
    %s16 = sphi 0, %s42
    %s17 = sphi 0, %s38
    %s18 = sphi 0, %s34
    %s19 = sphi 0, %s30
    %s20 = sphi 0, %s16
    %s21 = sphi 0, %s17
    %s22 = sphi 0, %s18
    %s23 = sphi 0, %s19
    %s24 = sphi 0, %s20
    %s25 = sphi 0, %s21
    %s26 = sphi 0, %s22
    %s27 = sphi 0, %s23
    %s51 = sphi 0, %s53
    %s54 = sphi 0, %s51
    %s55 = sphi 0, %s54
    %s71 = sphi 0, %s55
    %s79 = sphi 0, %s81
    %s82 = sphi 0, %s79
    %s83 = sphi 0, %s82
    %s99 = sphi 0, %s83
    %s107 = sphi 0, %s109
    %s110 = sphi 0, %s107
    %s111 = sphi 0, %s110
    %s127 = sphi 0, %s111
    %s139 = sphi 0, %s141
    %s142 = sphi 0, %s139
    %s143 = sphi 0, %s142
    %s159 = sphi 0, %s143
  $region4: #{deconv3d_block_forward.5} parent=0 // loop_header_branch
    %12 = sbr.rel (%p10) target = $region8
  $region5: #{deconv3d_block_forward.5} parent=0 // loop_body
    %s14 = ssub.s32 %s9, 1
    %s15 = ssub.s32 %s9, 2
    %s28 = sadd.s32 1, %s19
    %p29 = scmp.ge.s32.totalorder %s28, 1
    %s30 = scalar_select %p29, 0, %s28
    %s31 = sadd.s32 1, %s18
    %s32 = scalar_select %p29, %s31, %s18
    %p33 = scmp.ge.s32.totalorder %s32, 2
    %s34 = scalar_select %p33, 0, %s32
    %s35 = sadd.s32 1, %s17
    %s36 = scalar_select %p33, %s35, %s17
    %p37 = scmp.ge.s32.totalorder %s36, 2
    %s38 = scalar_select %p37, 0, %s36
    %s39 = sadd.s32 1, %s16
    %s40 = scalar_select %p37, %s39, %s16
    %p41 = scmp.ge.s32.totalorder %s40, 8
    %s42 = scalar_select %p41, 0, %s40
    %s43 = ssub.s32 %s17, %s38
    %s44 = ssub.s32 %s16, %s42
    %s45 = sor.u32 %s43, %s44
    %s46 = ssub.s32 %s18, %s34
    %s47 = sor.u32 %s45, %s46
    %s48 = ssub.s32 %s19, %s30
    %s49 = sor.u32 %s47, %s48
    %p50 = scmp.eq.s32.totalorder %s49, 0
    %s52 = sadd.s32 %s51, 1
    %s53 = scalar_select %p50, %s51, %s52
    %p56 = pneg %p50
    %p57 = scmp.eq.s32.totalorder %s9, 31
    %p58 = por %p56, %p57
    %p59 = scmp.ne.s32.totalorder %s51, %s54
    %p60 = scmp.eq.s32.totalorder %s9, 0
    %p61 = por %p59, %p60
    %p62 = scmp.ne.s32.totalorder %s51, %s54
    %p63 = scmp.eq.s32.totalorder %s14, 31
    %p64 = por %p62, %p63
    %p65 = scmp.ne.s32.totalorder %s54, %s55
    %p66 = scmp.eq.s32.totalorder %s14, 0
    %p67 = por %p65, %p66
    %p68 = scmp.ne.s32.totalorder %s54, %s55
    %p69 = scmp.eq.s32.totalorder %s15, 31
    %p70 = por %p68, %p69
    %p72 = scmp.ne.s32.totalorder %s55, %s71
    %p73 = scmp.eq.s32.totalorder %s15, 0
    %p74 = por %p72, %p73
    %s75 = ssub.s32 %s17, %s38
    %s76 = ssub.s32 %s18, %s34
    %s77 = sor.u32 %s75, %s76
    %p78 = scmp.eq.s32.totalorder %s77, 0
    %s80 = sadd.s32 %s79, 1
    %s81 = scalar_select %p78, %s79, %s80
    %p84 = pneg %p78
    %p85 = scmp.eq.s32.totalorder %s9, 31
    %p86 = por %p84, %p85
    %p87 = scmp.ne.s32.totalorder %s79, %s82
    %p88 = scmp.eq.s32.totalorder %s9, 0
    %p89 = por %p87, %p88
    %p90 = scmp.ne.s32.totalorder %s79, %s82
    %p91 = scmp.eq.s32.totalorder %s14, 31
    %p92 = por %p90, %p91
    %p93 = scmp.ne.s32.totalorder %s82, %s83
    %p94 = scmp.eq.s32.totalorder %s14, 0
    %p95 = por %p93, %p94
    %p96 = scmp.ne.s32.totalorder %s82, %s83
    %p97 = scmp.eq.s32.totalorder %s15, 31
    %p98 = por %p96, %p97
    %p100 = scmp.ne.s32.totalorder %s83, %s99
    %p101 = scmp.eq.s32.totalorder %s15, 0
    %p102 = por %p100, %p101
    %s103 = ssub.s32 %s17, %s38
    %s104 = ssub.s32 %s18, %s34
    %s105 = sor.u32 %s103, %s104
    %p106 = scmp.eq.s32.totalorder %s105, 0
    %s108 = sadd.s32 %s107, 1
    %s109 = scalar_select %p106, %s107, %s108
    %p112 = pneg %p106
    %p113 = scmp.eq.s32.totalorder %s9, 31
    %p114 = por %p112, %p113
    %p115 = scmp.ne.s32.totalorder %s107, %s110
    %p116 = scmp.eq.s32.totalorder %s9, 0
    %p117 = por %p115, %p116
    %p118 = scmp.ne.s32.totalorder %s107, %s110
    %p119 = scmp.eq.s32.totalorder %s14, 31
    %p120 = por %p118, %p119
    %p121 = scmp.ne.s32.totalorder %s110, %s111
    %p122 = scmp.eq.s32.totalorder %s14, 0
    %p123 = por %p121, %p122
    %p124 = scmp.ne.s32.totalorder %s110, %s111
    %p125 = scmp.eq.s32.totalorder %s15, 31
    %p126 = por %p124, %p125
    %p128 = scmp.ne.s32.totalorder %s111, %s127
    %p129 = scmp.eq.s32.totalorder %s15, 0
    %p130 = por %p128, %p129
    %s131 = ssub.s32 %s17, %s38
    %s132 = ssub.s32 %s16, %s42
    %s133 = sor.u32 %s131, %s132
    %s134 = ssub.s32 %s18, %s34
    %s135 = sor.u32 %s133, %s134
    %s136 = ssub.s32 %s19, %s30
    %s137 = sor.u32 %s135, %s136
    %p138 = scmp.eq.s32.totalorder %s137, 0
    %s140 = sadd.s32 %s139, 1
    %s141 = scalar_select %p138, %s139, %s140
    %p144 = pneg %p138
    %p145 = scmp.eq.s32.totalorder %s9, 31
    %p146 = por %p144, %p145
    %p147 = scmp.ne.s32.totalorder %s139, %s142
    %p148 = scmp.eq.s32.totalorder %s9, 0
    %p149 = por %p147, %p148
    %p150 = scmp.ne.s32.totalorder %s139, %s142
    %p151 = scmp.eq.s32.totalorder %s14, 31
    %p152 = por %p150, %p151
    %p153 = scmp.ne.s32.totalorder %s142, %s143
    %p154 = scmp.eq.s32.totalorder %s14, 0
    %p155 = por %p153, %p154
    %p156 = scmp.ne.s32.totalorder %s142, %s143
    %p157 = scmp.eq.s32.totalorder %s15, 31
    %p158 = por %p156, %p157
    %p160 = scmp.ne.s32.totalorder %s143, %s159
    %p161 = scmp.eq.s32.totalorder %s15, 0
    %p162 = por %p160, %p161
    %p163 = scmp.le.s32.totalorder 1, %s9
    %p164 = scmp.lt.s32.totalorder %s9, 33
    %p165 = pnand %p163, %p164
    %p166 = pneg %p165
    // Predicated region
    $region9: #{deconv3d_block_forward.5} parent=5 // pred_check
      _
    $region10: #{deconv3d_block_forward.5} parent=5 // pred_check_branch
      %168 = sbr.rel (%p165) target = $region12
    $region11: #{deconv3d_block_forward.5} parent=5 // pred_region
      %s169 = ssub.s32 %s9, 1
    $region12: #{deconv3d_block_forward.5} parent=5 // pred_fallthru
      _
    %p170 = scmp.lt.s32.totalorder %s9, 32
    // Predicated region
    $region13: #{deconv3d_block_forward.5} parent=5 // pred_check
      %p171 = pneg %p170
    $region14: #{deconv3d_block_forward.5} parent=5 // pred_check_branch
      %173 = sbr.rel (%p171) target = $region16
    $region15: #{deconv3d_block_forward.5} parent=5 // pred_region
      // Predicated region
      $region17: #{deconv3d_block_forward.5} parent=15 // pred_check
        %p174 = pneg %p61
      $region18: #{deconv3d_block_forward.5} parent=15 // pred_check_branch
        %176 = sbr.rel (%p174) target = $region20
      $region19: #{deconv3d_block_forward.5} parent=15 // pred_region
        %p177 = scmp.lt.s32.totalorder %s17, 1
        %s178 = scalar_select %p177, %s17, 1
        %p179 = scmp.lt.s32.totalorder %s16, 7
        %s180 = scalar_select %p179, %s16, 7
        %p181 = scmp.lt.s32.totalorder %s18, 1
        %s182 = scalar_select %p181, %s18, 1
        %p183 = scmp.lt.s32.totalorder %s19, 0
        %s184 = scalar_select %p183, %s19, 0
        %s185 = sadd.s32 %s184, %s182
        %s186 = smul.addr %s180, 2
        %s187 = sadd.s32 %s185, %s186
        %s188 = smul.addr %s178, 16
        %s189 = sadd.s32 %s187, %s188
        %s190 = smul.addr %s189, 4
        %s191 = scalar_lea.vmem %s0, %s190
      $region20: #{deconv3d_block_forward.5} parent=15 // pred_fallthru
        _
      // Predicated region
      $region21: #{deconv3d_block_forward.5} parent=15 // pred_check
        %p192 = pneg %p89
      $region22: #{deconv3d_block_forward.5} parent=15 // pred_check_branch
        %194 = sbr.rel (%p192) target = $region24
      $region23: #{deconv3d_block_forward.5} parent=15 // pred_region
        %p195 = scmp.lt.s32.totalorder %s17, 1
        %s196 = scalar_select %p195, %s17, 1
        %p197 = scmp.lt.s32.totalorder %s18, 1
        %s198 = scalar_select %p197, %s18, 1
        %s199 = smul.addr %s196, 2
        %s200 = sadd.s32 %s198, %s199
        %s201 = smul.addr %s200, 4
        %s202 = scalar_lea.vmem %s1, %s201
      $region24: #{deconv3d_block_forward.5} parent=15 // pred_fallthru
        _
      // Predicated region
      $region25: #{deconv3d_block_forward.5} parent=15 // pred_check
        %p203 = pneg %p117
      $region26: #{deconv3d_block_forward.5} parent=15 // pred_check_branch
        %205 = sbr.rel (%p203) target = $region28
      $region27: #{deconv3d_block_forward.5} parent=15 // pred_region
        %p206 = scmp.lt.s32.totalorder %s17, 1
        %s207 = scalar_select %p206, %s17, 1
        %p208 = scmp.lt.s32.totalorder %s18, 1
        %s209 = scalar_select %p208, %s18, 1
        %s210 = smul.addr %s207, 2
        %s211 = sadd.s32 %s209, %s210
        %s212 = smul.addr %s211, 4
        %s213 = scalar_lea.vmem %s2, %s212
      $region28: #{deconv3d_block_forward.5} parent=15 // pred_fallthru
        _
    $region16: #{deconv3d_block_forward.5} parent=5 // pred_fallthru
      _
    %p214 = scmp.le.s32.totalorder 1, %s9
    %p215 = scmp.lt.s32.totalorder %s9, 33
    %p216 = pnand %p214, %p215
    %p217 = pneg %p216
    // Predicated region
    $region29: #{deconv3d_block_forward.5} parent=5 // pred_check
      _
    $region30: #{deconv3d_block_forward.5} parent=5 // pred_check_branch
      %219 = sbr.rel (%p216) target = $region32
    $region31: #{deconv3d_block_forward.5} parent=5 // pred_region
      %s220 = ssub.s32 %s9, 1
      %p221 = scmp.lt.s32.totalorder %s21, 1
      %s222 = scalar_select %p221, %s21, 1
      %p223 = scmp.lt.s32.totalorder %s20, 7
      %s224 = scalar_select %p223, %s20, 7
      %p225 = scmp.lt.s32.totalorder %s22, 1
      %s226 = scalar_select %p225, %s22, 1
      %p227 = scmp.lt.s32.totalorder %s23, 0
      %s228 = scalar_select %p227, %s23, 0
      %s229 = sadd.s32 %s228, %s226
      %s230 = smul.addr %s224, 2
      %s231 = sadd.s32 %s229, %s230
      %s232 = smul.addr %s222, 16
      %s233 = sadd.s32 %s231, %s232
      %s234 = smul.addr %s233, 4
      %s235 = scalar_lea.vmem %s0, %s234
      %p236 = pneg %p67
      %p237 = pneg %p64
      %p238 = scmp.lt.s32.totalorder %s21, 1
      %s239 = scalar_select %p238, %s21, 1
      %p240 = scmp.lt.s32.totalorder %s22, 1
      %s241 = scalar_select %p240, %s22, 1
      %s242 = smul.addr %s239, 2
      %s243 = sadd.s32 %s241, %s242
      %s244 = smul.addr %s243, 4
      %s245 = scalar_lea.vmem %s1, %s244
      %p246 = pneg %p95
      %p247 = pneg %p92
      %p248 = scmp.lt.s32.totalorder %s21, 1
      %s249 = scalar_select %p248, %s21, 1
      %p250 = scmp.lt.s32.totalorder %s22, 1
      %s251 = scalar_select %p250, %s22, 1
      %s252 = smul.addr %s249, 2
      %s253 = sadd.s32 %s251, %s252
      %s254 = smul.addr %s253, 4
      %s255 = scalar_lea.vmem %s2, %s254
      %p256 = pneg %p123
      %p257 = pneg %p120
      %p258 = pneg %p155
      %p259 = pneg %p152
      %p260 = scmp.lt.s32.totalorder %s21, 1
      %s261 = scalar_select %p260, %s21, 1
      %p262 = scmp.lt.s32.totalorder %s20, 7
      %s263 = scalar_select %p262, %s20, 7
      %p264 = scmp.lt.s32.totalorder %s22, 1
      %s265 = scalar_select %p264, %s22, 1
      %p266 = scmp.lt.s32.totalorder %s23, 0
      %s267 = scalar_select %p266, %s23, 0
      %s268 = sadd.s32 %s267, %s265
      %s269 = smul.addr %s263, 2
      %s270 = sadd.s32 %s268, %s269
      %s271 = smul.addr %s261, 16
      %s272 = sadd.s32 %s270, %s271
      %s273 = smul.addr %s272, 4
      %s274 = scalar_lea.vmem %s3, %s273
      %p275 = scmp.lt.s32.totalorder %s21, 1
      %s276 = scalar_select %p275, %s21, 1
      %p277 = scmp.lt.s32.totalorder %s20, 7
      %s278 = scalar_select %p277, %s20, 7
      %p279 = scmp.lt.s32.totalorder %s22, 1
      %s280 = scalar_select %p279, %s22, 1
      %p281 = scmp.lt.s32.totalorder %s23, 0
      %s282 = scalar_select %p281, %s23, 0
      %s283 = sadd.s32 %s282, %s280
      %s284 = smul.addr %s278, 2
      %s285 = sadd.s32 %s283, %s284
      %s286 = smul.addr %s276, 16
      %s287 = sadd.s32 %s285, %s286
      %s288 = smul.addr %s287, 4
      %s289 = scalar_lea.vmem %s0, %s288
      %p290 = scmp.lt.s32.totalorder %s21, 1
      %s291 = scalar_select %p290, %s21, 1
      %p292 = scmp.lt.s32.totalorder %s22, 1
      %s293 = scalar_select %p292, %s22, 1
      %s294 = smul.addr %s291, 2
      %s295 = sadd.s32 %s293, %s294
      %s296 = smul.addr %s295, 4
      %s297 = scalar_lea.vmem %s1, %s296
      %p298 = scmp.lt.s32.totalorder %s21, 1
      %s299 = scalar_select %p298, %s21, 1
      %p300 = scmp.lt.s32.totalorder %s22, 1
      %s301 = scalar_select %p300, %s22, 1
      %s302 = smul.addr %s299, 2
      %s303 = sadd.s32 %s301, %s302
      %s304 = smul.addr %s303, 4
      %s305 = scalar_lea.vmem %s2, %s304
      %p306 = scmp.lt.s32.totalorder %s21, 1
      %s307 = scalar_select %p306, %s21, 1
      %p308 = scmp.lt.s32.totalorder %s20, 7
      %s309 = scalar_select %p308, %s20, 7
      %p310 = scmp.lt.s32.totalorder %s22, 1
      %s311 = scalar_select %p310, %s22, 1
      %p312 = scmp.lt.s32.totalorder %s23, 0
      %s313 = scalar_select %p312, %s23, 0
      %s314 = sadd.s32 %s313, %s311
      %s315 = smul.addr %s309, 2
      %s316 = sadd.s32 %s314, %s315
      %s317 = smul.addr %s307, 16
      %s318 = sadd.s32 %s316, %s317
      %s319 = smul.addr %s318, 4
      %s320 = scalar_lea.vmem %s3, %s319
      %v321 = vld [vmem:[%s289] sm:$0xf]
      %v322 = vld [vmem:[%s297] sm:$0xf]
      %324 = vset.pattern.permute.xlu0 0
      %325 = vperm.xlu0 %324, %v322
      %v326 = vpop.permute.xlu0 %325
      %v328 = vmul.f32 %v321, %v326
      %v329 = vld [vmem:[%s305] sm:$0xf]
      %331 = vset.pattern.permute.xlu0 0
      %332 = vperm.xlu0 %331, %v329
      %v333 = vpop.permute.xlu0 %332
      %v335 = vadd.f32 %v328, %v333
      %v336 = vmax.f32 %v335, 0.0
      %vm337 = vcmask 650240
      %338 = vst.msk [vmem:[%s320] sm:$0xf] %vm337, %v336
      %p339 = scmp.lt.s32.totalorder %s21, 1
      %s340 = scalar_select %p339, %s21, 1
      %p341 = scmp.lt.s32.totalorder %s20, 7
      %s342 = scalar_select %p341, %s20, 7
      %p343 = scmp.lt.s32.totalorder %s22, 1
      %s344 = scalar_select %p343, %s22, 1
      %p345 = scmp.lt.s32.totalorder %s23, 0
      %s346 = scalar_select %p345, %s23, 0
      %s347 = sadd.s32 %s346, %s344
      %s348 = smul.addr %s342, 2
      %s349 = sadd.s32 %s347, %s348
      %s350 = smul.addr %s340, 16
      %s351 = sadd.s32 %s349, %s350
      %s352 = smul.addr %s351, 4
      %s353 = scalar_lea.vmem %s3, %s352
      // Predicated region
      $region33: #{deconv3d_block_forward.5} parent=31 // pred_check
        %p354 = pneg %p152
      $region34: #{deconv3d_block_forward.5} parent=31 // pred_check_branch
        %356 = sbr.rel (%p354) target = $region36
      $region35: #{deconv3d_block_forward.5} parent=31 // pred_region
        _
      $region36: #{deconv3d_block_forward.5} parent=31 // pred_fallthru
        _
    $region32: #{deconv3d_block_forward.5} parent=5 // pred_fallthru
      _
    %p357 = scmp.le.s32.totalorder 2, %s9
    // Predicated region
    $region37: #{deconv3d_block_forward.5} parent=5 // pred_check
      %p358 = pneg %p357
    $region38: #{deconv3d_block_forward.5} parent=5 // pred_check_branch
      %360 = sbr.rel (%p358) target = $region40
    $region39: #{deconv3d_block_forward.5} parent=5 // pred_region
      %s361 = ssub.s32 %s9, 2
      // Predicated region
      $region41: #{deconv3d_block_forward.5} parent=39 // pred_check
        %p362 = pneg %p158
      $region42: #{deconv3d_block_forward.5} parent=39 // pred_check_branch
        %364 = sbr.rel (%p362) target = $region44
      $region43: #{deconv3d_block_forward.5} parent=39 // pred_region
        %p365 = scmp.lt.s32.totalorder %s25, 1
        %s366 = scalar_select %p365, %s25, 1
        %p367 = scmp.lt.s32.totalorder %s24, 7
        %s368 = scalar_select %p367, %s24, 7
        %p369 = scmp.lt.s32.totalorder %s26, 1
        %s370 = scalar_select %p369, %s26, 1
        %p371 = scmp.lt.s32.totalorder %s27, 0
        %s372 = scalar_select %p371, %s27, 0
        %s373 = sadd.s32 %s372, %s370
        %s374 = smul.addr %s368, 2
        %s375 = sadd.s32 %s373, %s374
        %s376 = smul.addr %s366, 16
        %s377 = sadd.s32 %s375, %s376
        %s378 = smul.addr %s377, 4
        %s379 = scalar_lea.vmem %s3, %s378
      $region44: #{deconv3d_block_forward.5} parent=39 // pred_fallthru
        _
    $region40: #{deconv3d_block_forward.5} parent=5 // pred_fallthru
      _
  $region6: #{deconv3d_block_forward.5} parent=0 // loop_footer
    %s13 = sadd.s32 1, %s9
  $region7: #{deconv3d_block_forward.5} parent=0 // loop_footer_branch
    %8 = sbr.rel target = $region3
  $region8: #{deconv3d_block_forward.5} parent=0 // loop_exit
    _

</llo_original>
